<compile_context>
chip_gen: v7x
topology: tpu7x:2x2x1
jax: 0.10.0
libtpu: 0.0.40
codegen_flags: <defaults>
</compile_context>

<pallas_src>
import jax
import jax.numpy as jnp
from jax import lax
from jax.experimental import pallas as pl
from jax.experimental.pallas import tpu as pltpu


def _critic_kernel(x_ref,      # (T*B, Dp)  time-major, flattened, D zero-padded to Dp
                   w_ref,      # (Dp + 3H + 24, 4H) packed weights (see _pack_params)
                   out_ref):   # (B, 1)
    # Static shape info.
    B = out_ref.shape[0]
    G = w_ref.shape[1]            # 4H (gate axis on the lane dimension)
    H = G // 4
    Dp = x_ref.shape[1]           # input dim padded to a multiple of 8
    T = x_ref.shape[0] // B

    # Packed-weight row offsets (all 8-row aligned; must match _pack_params).
    o_wih0 = 0
    o_whh0 = Dp
    o_b0 = o_whh0 + H
    o_w1 = o_b0 + 8
    o_b1 = o_w1 + 2 * H
    o_lin = o_b1 + 8

    wih0 = w_ref[o_wih0:o_wih0 + Dp, :]          # (Dp, 4H)
    whh0 = w_ref[o_whh0:o_whh0 + H, :]           # (H, 4H)
    b0 = w_ref[o_b0:o_b0 + 1, :]                 # (1, 4H)  = b_ih_l0 + b_hh_l0
    w1 = w_ref[o_w1:o_w1 + 2 * H, :]             # (2H, 4H) = [W_ih_l1; W_hh_l1]^T
    b1 = w_ref[o_b1:o_b1 + 1, :]                 # (1, 4H)  = b_ih_l1 + b_hh_l1
    wlin = w_ref[o_lin:o_lin + 1, 0:H]           # (1, H)
    blin = w_ref[o_lin + 1:o_lin + 2, 0:1]       # (1, 1)

    # Hoisted layer-0 input projection: one (T*B, Dp) @ (Dp, 4H) MXU matmul
    # replaces T tiny per-step matmuls; bias folded in here.
    xw0 = jnp.dot(x_ref[...], wih0, preferred_element_type=jnp.float32) + b0

    # Lane mask selecting the cell ("g") gate positions [2H, 3H).
    lane = lax.broadcasted_iota(jnp.int32, (B, G), 1)
    g_gate = (lane >= 2 * H) & (lane < 3 * H)

    def activate(gates):
        # sigmoid(x) == 0.5*(tanh(x/2)+1): full-vreg EUP work, no VALU divide.
        sig = 0.5 * (jnp.tanh(0.5 * gates) + 1.0)
        th = jnp.tanh(gates)
        return jnp.where(g_gate, th, sig)

    zeros = jnp.zeros((B, H), jnp.float32)
    h0, c0, h1, c1 = zeros, zeros, zeros, zeros

    # Fully unrolled time loop (T is a small static trip count) -> static slices
    # of xw0 and full cross-step visibility for the scheduler.
    for t in range(T):
        # ---- layer 0: only the hidden-state matmul remains on the serial path
        g0 = xw0[t * B:(t + 1) * B, :] + jnp.dot(
            h0, whh0, preferred_element_type=jnp.float32)
        a0 = activate(g0)
        i0 = a0[:, 0:H]
        f0 = a0[:, H:2 * H]
        gg0 = a0[:, 2 * H:3 * H]
        o0 = a0[:, 3 * H:4 * H]
        c0 = f0 * c0 + i0 * gg0
        h0 = o0 * jnp.tanh(c0)

        # ---- layer 1: fused input+hidden matmul on the concatenated state ----
        g1 = jnp.dot(jnp.concatenate([h0, h1], axis=1), w1,
                     preferred_element_type=jnp.float32) + b1
        a1 = activate(g1)
        i1 = a1[:, 0:H]
        f1 = a1[:, H:2 * H]
        gg1 = a1[:, 2 * H:3 * H]
        o1 = a1[:, 3 * H:4 * H]
        c1 = f1 * c1 + i1 * gg1
        h1 = o1 * jnp.tanh(c1)

    # h[0][1] in PyTorch == final hidden of the 2nd layer -> ReLU -> Linear.
    # Final Linear done as VPU multiply + lane reduction (no N=1 MXU push).
    ff = jnp.maximum(h1, 0.0)
    out_ref[...] = jnp.sum(ff * wlin, axis=-1, keepdims=True) + blin


def _pack_params(params, D, H):
    """Pack all weights/biases into one (Dp + 3H + 24, 4H) f32 array.

    Segments (row offsets are 8-aligned, matching _critic_kernel):
      [0, Dp)              W_ih_l0^T   (zero-padded rows D..Dp)
      [Dp, Dp+H)           W_hh_l0^T
      [Dp+H, +8)           b_ih_l0 + b_hh_l0     (row 0 of an 8-row pad block)
      [Dp+H+8, +2H)        [W_ih_l1^T ; W_hh_l1^T]
      [Dp+3H+8, +8)        b_ih_l1 + b_hh_l1     (row 0)
      [Dp+3H+16, +8)       row 0: W_lin (first H lanes), row 1: b_lin (lane 0)
    """
    G = 4 * H
    Dp = max(8, -(-D // 8) * 8)
    assert H % 8 == 0, "hidden_dim must be a multiple of 8 for this packing"

    def rows(a, n):
        a = jnp.asarray(a, jnp.float32)
        return jnp.zeros((n, G), jnp.float32).at[:a.shape[0], :a.shape[1]].set(a)

    wih0 = rows(params["wih0"].T, Dp)                                    # (Dp, G)
    whh0 = jnp.asarray(params["whh0"].T, jnp.float32)                    # (H, G)
    b0 = rows((params["bih0"] + params["bhh0"]).reshape(1, G), 8)        # (8, G)
    w1 = jnp.concatenate([params["wih1"].T, params["whh1"].T],
                         axis=0).astype(jnp.float32)                     # (2H, G)
    b1 = rows((params["bih1"] + params["bhh1"]).reshape(1, G), 8)        # (8, G)
    lin = jnp.zeros((8, G), jnp.float32)
    lin = lin.at[0, :H].set(params["wlin"].reshape(H).astype(jnp.float32))
    lin = lin.at[1, 0].set(params["blin"].reshape(()).astype(jnp.float32))

    return jnp.concatenate([wih0, whh0, b0, w1, b1, lin], axis=0), Dp


def critic_net_forward(x_btd, params):
    """x_btd: (B, T, D) batch_first float32 input. Returns value of shape (B, 1)."""
    B, T, D = x_btd.shape
    H = params["whh0"].shape[1]            # weight_hh_l0 has shape (4H, H)

    w_pack, Dp = _pack_params(params, D, H)

    # time-major, flattened to (T*B, Dp), input dim zero-padded to Dp.
    x_tbd = jnp.transpose(x_btd, (1, 0, 2)).astype(jnp.float32)
    x_flat = jnp.zeros((T * B, Dp), jnp.float32).at[:, :D].set(
        x_tbd.reshape(T * B, D))

    vmem = pl.BlockSpec(memory_space=pltpu.MemorySpace.VMEM)
    return pl.pallas_call(
        _critic_kernel,
        out_shape=jax.ShapeDtypeStruct((B, 1), jnp.float32),
        in_specs=[vmem, vmem],
        out_specs=vmem,
        # No grid: whole problem fits VMEM; a grid at these shapes is pure
        # per-step overhead.  TODO(synk): for production shapes add a "parallel"
        # batch grid axis (v7x dual-TC), bf16 weights, and T-chunk streaming.
    )(x_flat, w_pack)


def init_params(key, input_dim, hidden_dim):
    """Deterministic parameter init mirroring PyTorch LSTM/Linear shapes."""
    H, D = hidden_dim, input_dim
    k = 1.0 / jnp.sqrt(jnp.float32(H))
    keys = jax.random.split(key, 10)

    def u(kk, shape):
        return jax.random.uniform(kk, shape, jnp.float32, minval=-k, maxval=k)

    return {
        "wih0": u(keys[0], (4 * H, D)),
        "whh0": u(keys[1], (4 * H, H)),
        "bih0": u(keys[2], (4 * H,)),
        "bhh0": u(keys[3], (4 * H,)),
        "wih1": u(keys[4], (4 * H, H)),
        "whh1": u(keys[5], (4 * H, H)),
        "bih1": u(keys[6], (4 * H,)),
        "bhh1": u(keys[7], (4 * H,)),
        "wlin": u(keys[8], (1, H)),
        "blin": u(keys[9], (1,)),
    }


def reference_forward(x_btd, params):
    """Pure-JAX reference of the same eval-mode forward pass (PyTorch semantics)."""
    B, T, D = x_btd.shape
    H = params["whh0"].shape[1]

    def sigmoid(v):
        return 1.0 / (1.0 + jnp.exp(-v))

    def cell(x_t, h, c, wih, whh, b):
        g = x_t @ wih.T + h @ whh.T + b
        i, f, gg, o = (sigmoid(g[:, :H]), sigmoid(g[:, H:2 * H]),
                       jnp.tanh(g[:, 2 * H:3 * H]), sigmoid(g[:, 3 * H:]))
        c = f * c + i * gg
        return o * jnp.tanh(c), c

    h0 = c0 = h1 = c1 = jnp.zeros((B, H), jnp.float32)
    b0 = params["bih0"] + params["bhh0"]
    b1 = params["bih1"] + params["bhh1"]
    for t in range(T):
        x_t = x_btd[:, t, :]
        h0, c0 = cell(x_t, h0, c0, params["wih0"], params["whh0"], b0)
        h1, c1 = cell(h0, h1, c1, params["wih1"], params["whh1"], b1)
    ff = jnp.maximum(h1, 0.0)
    return ff @ params["wlin"].T + params["blin"]


if __name__ == "__main__":
    # small shapes consistent with CriticNet(input_dim, hidden_dim, seq_len)
    B, T, D, H = 2, 8, 4, 32   # CriticNet(input_dim=4, hidden_dim=32, seq_len=8)

    key = jax.random.PRNGKey(0)
    k_x, k_p = jax.random.split(key)
    x = jax.random.normal(k_x, (B, T, D), dtype=jnp.float32)
    params = init_params(k_p, D, H)

    value = critic_net_forward(x, params)
    value = jax.block_until_ready(value)

    ref = reference_forward(x, params)
    assert value.shape == (B, 1)
    assert jnp.allclose(value, ref, rtol=1e-4, atol=1e-5), (value, ref)

    print("KERNEL_OK")
</pallas_src>

<mosaic_0001>
module attributes {stable_mosaic.version = 11 : i64} {
  func.func @_critic_kernel(%arg0: memref<16x8xf32, #tpu.memory_space<vmem>>, %arg1: memref<128x128xf32, #tpu.memory_space<vmem>>, %arg2: memref<2x1xf32, #tpu.memory_space<vmem>>) attributes {dimension_semantics = [], scalar_prefetch = 0 : i64, scratch_operands = 0 : i64, tpu.core_type = #tpu.core_type<tc>} {
    %c0 = arith.constant 0 : index
    %c0_0 = arith.constant 0 : index
    %0 = vector.load %arg1[%c0, %c0_0] : memref<128x128xf32, #tpu.memory_space<vmem>>, vector<8x128xf32>
    %c8 = arith.constant 8 : index
    %c0_1 = arith.constant 0 : index
    %1 = vector.load %arg1[%c8, %c0_1] : memref<128x128xf32, #tpu.memory_space<vmem>>, vector<32x128xf32>
    %c40 = arith.constant 40 : index
    %c0_2 = arith.constant 0 : index
    %2 = vector.load %arg1[%c40, %c0_2] : memref<128x128xf32, #tpu.memory_space<vmem>>, vector<1x128xf32>
    %c48 = arith.constant 48 : index
    %c0_3 = arith.constant 0 : index
    %3 = vector.load %arg1[%c48, %c0_3] : memref<128x128xf32, #tpu.memory_space<vmem>>, vector<64x128xf32>
    %c112 = arith.constant 112 : index
    %c0_4 = arith.constant 0 : index
    %4 = vector.load %arg1[%c112, %c0_4] : memref<128x128xf32, #tpu.memory_space<vmem>>, vector<1x128xf32>
    %c120 = arith.constant 120 : index
    %c0_5 = arith.constant 0 : index
    %5 = vector.load %arg1[%c120, %c0_5] : memref<128x128xf32, #tpu.memory_space<vmem>>, vector<1x32xf32>
    %c121 = arith.constant 121 : index
    %c0_6 = arith.constant 0 : index
    %6 = vector.load %arg1[%c121, %c0_6] : memref<128x128xf32, #tpu.memory_space<vmem>>, vector<1x1xf32>
    %c0_7 = arith.constant 0 : index
    %c0_8 = arith.constant 0 : index
    %7 = vector.load %arg0[%c0_7, %c0_8] : memref<16x8xf32, #tpu.memory_space<vmem>>, vector<16x8xf32>
    %cst = arith.constant dense<0.000000e+00> : vector<16x128xf32>
    %8 = tpu.matmul %7, %0, %cst {dimension_numbers = #tpu.dot_dimension_numbers<[1], [0], [0], [1], [0, 0, 1, 1], [], []>} : vector<16x8xf32>, vector<8x128xf32>, vector<16x128xf32> -> vector<16x128xf32>
    %9 = vector.broadcast %2 : vector<1x128xf32> to vector<16x128xf32>
    %10 = arith.addf %8, %9 : vector<16x128xf32>
    %11 = tpu.iota {dimensions = array<i32: 1>} : vector<2x128xi32>
    %c64_i32 = arith.constant 64 : i32
    %12 = vector.broadcast %c64_i32 : i32 to vector<2x128xi32>
    %13 = arith.cmpi sge, %11, %12 : vector<2x128xi32>
    %c96_i32 = arith.constant 96 : i32
    %14 = vector.broadcast %c96_i32 : i32 to vector<2x128xi32>
    %15 = arith.cmpi slt, %11, %14 : vector<2x128xi32>
    %16 = arith.andi %13, %15 : vector<2x128xi1>
    %cst_9 = arith.constant 0.000000e+00 : f32
    %17 = vector.broadcast %cst_9 : f32 to vector<2x32xf32>
    %18 = vector.extract_strided_slice %10 {offsets = [0, 0], sizes = [2, 128], strides = [1, 1]} : vector<16x128xf32> to vector<2x128xf32>
    %cst_10 = arith.constant dense<0.000000e+00> : vector<2x128xf32>
    %19 = tpu.matmul %17, %1, %cst_10 {dimension_numbers = #tpu.dot_dimension_numbers<[1], [0], [0], [1], [0, 0, 1, 1], [], []>} : vector<2x32xf32>, vector<32x128xf32>, vector<2x128xf32> -> vector<2x128xf32>
    %20 = arith.addf %18, %19 : vector<2x128xf32>
    %cst_11 = arith.constant 5.000000e-01 : f32
    %21 = vector.broadcast %cst_11 : f32 to vector<2x128xf32>
    %22 = arith.mulf %21, %20 : vector<2x128xf32>
    %23 = math.tanh %22 : vector<2x128xf32>
    %cst_12 = arith.constant 1.000000e+00 : f32
    %24 = vector.broadcast %cst_12 : f32 to vector<2x128xf32>
    %25 = arith.addf %23, %24 : vector<2x128xf32>
    %cst_13 = arith.constant 5.000000e-01 : f32
    %26 = vector.broadcast %cst_13 : f32 to vector<2x128xf32>
    %27 = arith.mulf %26, %25 : vector<2x128xf32>
    %28 = math.tanh %20 : vector<2x128xf32>
    %29 = arith.select %16, %28, %27 : vector<2x128xi1>, vector<2x128xf32>
    %30 = vector.extract_strided_slice %29 {offsets = [0, 0], sizes = [2, 32], strides = [1, 1]} : vector<2x128xf32> to vector<2x32xf32>
    %31 = vector.extract_strided_slice %29 {offsets = [0, 32], sizes = [2, 32], strides = [1, 1]} : vector<2x128xf32> to vector<2x32xf32>
    %32 = vector.extract_strided_slice %29 {offsets = [0, 64], sizes = [2, 32], strides = [1, 1]} : vector<2x128xf32> to vector<2x32xf32>
    %33 = vector.extract_strided_slice %29 {offsets = [0, 96], sizes = [2, 32], strides = [1, 1]} : vector<2x128xf32> to vector<2x32xf32>
    %34 = arith.mulf %31, %17 : vector<2x32xf32>
    %35 = arith.mulf %30, %32 : vector<2x32xf32>
    %36 = arith.addf %34, %35 : vector<2x32xf32>
    %37 = math.tanh %36 : vector<2x32xf32>
    %38 = arith.mulf %33, %37 : vector<2x32xf32>
    %39 = tpu.concatenate %38, %17 in 1 : vector<2x32xf32>, vector<2x32xf32> -> vector<2x64xf32>
    %cst_14 = arith.constant dense<0.000000e+00> : vector<2x128xf32>
    %40 = tpu.matmul %39, %3, %cst_14 {dimension_numbers = #tpu.dot_dimension_numbers<[1], [0], [0], [1], [0, 0, 1, 1], [], []>} : vector<2x64xf32>, vector<64x128xf32>, vector<2x128xf32> -> vector<2x128xf32>
    %41 = vector.broadcast %4 : vector<1x128xf32> to vector<2x128xf32>
    %42 = arith.addf %40, %41 : vector<2x128xf32>
    %cst_15 = arith.constant 5.000000e-01 : f32
    %43 = vector.broadcast %cst_15 : f32 to vector<2x128xf32>
    %44 = arith.mulf %43, %42 : vector<2x128xf32>
    %45 = math.tanh %44 : vector<2x128xf32>
    %cst_16 = arith.constant 1.000000e+00 : f32
    %46 = vector.broadcast %cst_16 : f32 to vector<2x128xf32>
    %47 = arith.addf %45, %46 : vector<2x128xf32>
    %cst_17 = arith.constant 5.000000e-01 : f32
    %48 = vector.broadcast %cst_17 : f32 to vector<2x128xf32>
    %49 = arith.mulf %48, %47 : vector<2x128xf32>
    %50 = math.tanh %42 : vector<2x128xf32>
    %51 = arith.select %16, %50, %49 : vector<2x128xi1>, vector<2x128xf32>
    %52 = vector.extract_strided_slice %51 {offsets = [0, 0], sizes = [2, 32], strides = [1, 1]} : vector<2x128xf32> to vector<2x32xf32>
    %53 = vector.extract_strided_slice %51 {offsets = [0, 32], sizes = [2, 32], strides = [1, 1]} : vector<2x128xf32> to vector<2x32xf32>
    %54 = vector.extract_strided_slice %51 {offsets = [0, 64], sizes = [2, 32], strides = [1, 1]} : vector<2x128xf32> to vector<2x32xf32>
    %55 = vector.extract_strided_slice %51 {offsets = [0, 96], sizes = [2, 32], strides = [1, 1]} : vector<2x128xf32> to vector<2x32xf32>
    %56 = arith.mulf %53, %17 : vector<2x32xf32>
    %57 = arith.mulf %52, %54 : vector<2x32xf32>
    %58 = arith.addf %56, %57 : vector<2x32xf32>
    %59 = math.tanh %58 : vector<2x32xf32>
    %60 = arith.mulf %55, %59 : vector<2x32xf32>
    %61 = vector.extract_strided_slice %10 {offsets = [2, 0], sizes = [2, 128], strides = [1, 1]} : vector<16x128xf32> to vector<2x128xf32>
    %cst_18 = arith.constant dense<0.000000e+00> : vector<2x128xf32>
    %62 = tpu.matmul %38, %1, %cst_18 {dimension_numbers = #tpu.dot_dimension_numbers<[1], [0], [0], [1], [0, 0, 1, 1], [], []>} : vector<2x32xf32>, vector<32x128xf32>, vector<2x128xf32> -> vector<2x128xf32>
    %63 = arith.addf %61, %62 : vector<2x128xf32>
    %cst_19 = arith.constant 5.000000e-01 : f32
    %64 = vector.broadcast %cst_19 : f32 to vector<2x128xf32>
    %65 = arith.mulf %64, %63 : vector<2x128xf32>
    %66 = math.tanh %65 : vector<2x128xf32>
    %cst_20 = arith.constant 1.000000e+00 : f32
    %67 = vector.broadcast %cst_20 : f32 to vector<2x128xf32>
    %68 = arith.addf %66, %67 : vector<2x128xf32>
    %cst_21 = arith.constant 5.000000e-01 : f32
    %69 = vector.broadcast %cst_21 : f32 to vector<2x128xf32>
    %70 = arith.mulf %69, %68 : vector<2x128xf32>
    %71 = math.tanh %63 : vector<2x128xf32>
    %72 = arith.select %16, %71, %70 : vector<2x128xi1>, vector<2x128xf32>
    %73 = vector.extract_strided_slice %72 {offsets = [0, 0], sizes = [2, 32], strides = [1, 1]} : vector<2x128xf32> to vector<2x32xf32>
    %74 = vector.extract_strided_slice %72 {offsets = [0, 32], sizes = [2, 32], strides = [1, 1]} : vector<2x128xf32> to vector<2x32xf32>
    %75 = vector.extract_strided_slice %72 {offsets = [0, 64], sizes = [2, 32], strides = [1, 1]} : vector<2x128xf32> to vector<2x32xf32>
    %76 = vector.extract_strided_slice %72 {offsets = [0, 96], sizes = [2, 32], strides = [1, 1]} : vector<2x128xf32> to vector<2x32xf32>
    %77 = arith.mulf %74, %36 : vector<2x32xf32>
    %78 = arith.mulf %73, %75 : vector<2x32xf32>
    %79 = arith.addf %77, %78 : vector<2x32xf32>
    %80 = math.tanh %79 : vector<2x32xf32>
    %81 = arith.mulf %76, %80 : vector<2x32xf32>
    %82 = tpu.concatenate %81, %60 in 1 : vector<2x32xf32>, vector<2x32xf32> -> vector<2x64xf32>
    %cst_22 = arith.constant dense<0.000000e+00> : vector<2x128xf32>
    %83 = tpu.matmul %82, %3, %cst_22 {dimension_numbers = #tpu.dot_dimension_numbers<[1], [0], [0], [1], [0, 0, 1, 1], [], []>} : vector<2x64xf32>, vector<64x128xf32>, vector<2x128xf32> -> vector<2x128xf32>
    %84 = vector.broadcast %4 : vector<1x128xf32> to vector<2x128xf32>
    %85 = arith.addf %83, %84 : vector<2x128xf32>
    %cst_23 = arith.constant 5.000000e-01 : f32
    %86 = vector.broadcast %cst_23 : f32 to vector<2x128xf32>
    %87 = arith.mulf %86, %85 : vector<2x128xf32>
    %88 = math.tanh %87 : vector<2x128xf32>
    %cst_24 = arith.constant 1.000000e+00 : f32
    %89 = vector.broadcast %cst_24 : f32 to vector<2x128xf32>
    %90 = arith.addf %88, %89 : vector<2x128xf32>
    %cst_25 = arith.constant 5.000000e-01 : f32
    %91 = vector.broadcast %cst_25 : f32 to vector<2x128xf32>
    %92 = arith.mulf %91, %90 : vector<2x128xf32>
    %93 = math.tanh %85 : vector<2x128xf32>
    %94 = arith.select %16, %93, %92 : vector<2x128xi1>, vector<2x128xf32>
    %95 = vector.extract_strided_slice %94 {offsets = [0, 0], sizes = [2, 32], strides = [1, 1]} : vector<2x128xf32> to vector<2x32xf32>
    %96 = vector.extract_strided_slice %94 {offsets = [0, 32], sizes = [2, 32], strides = [1, 1]} : vector<2x128xf32> to vector<2x32xf32>
    %97 = vector.extract_strided_slice %94 {offsets = [0, 64], sizes = [2, 32], strides = [1, 1]} : vector<2x128xf32> to vector<2x32xf32>
    %98 = vector.extract_strided_slice %94 {offsets = [0, 96], sizes = [2, 32], strides = [1, 1]} : vector<2x128xf32> to vector<2x32xf32>
    %99 = arith.mulf %96, %58 : vector<2x32xf32>
    %100 = arith.mulf %95, %97 : vector<2x32xf32>
    %101 = arith.addf %99, %100 : vector<2x32xf32>
    %102 = math.tanh %101 : vector<2x32xf32>
    %103 = arith.mulf %98, %102 : vector<2x32xf32>
    %104 = vector.extract_strided_slice %10 {offsets = [4, 0], sizes = [2, 128], strides = [1, 1]} : vector<16x128xf32> to vector<2x128xf32>
    %cst_26 = arith.constant dense<0.000000e+00> : vector<2x128xf32>
    %105 = tpu.matmul %81, %1, %cst_26 {dimension_numbers = #tpu.dot_dimension_numbers<[1], [0], [0], [1], [0, 0, 1, 1], [], []>} : vector<2x32xf32>, vector<32x128xf32>, vector<2x128xf32> -> vector<2x128xf32>
    %106 = arith.addf %104, %105 : vector<2x128xf32>
    %cst_27 = arith.constant 5.000000e-01 : f32
    %107 = vector.broadcast %cst_27 : f32 to vector<2x128xf32>
    %108 = arith.mulf %107, %106 : vector<2x128xf32>
    %109 = math.tanh %108 : vector<2x128xf32>
    %cst_28 = arith.constant 1.000000e+00 : f32
    %110 = vector.broadcast %cst_28 : f32 to vector<2x128xf32>
    %111 = arith.addf %109, %110 : vector<2x128xf32>
    %cst_29 = arith.constant 5.000000e-01 : f32
    %112 = vector.broadcast %cst_29 : f32 to vector<2x128xf32>
    %113 = arith.mulf %112, %111 : vector<2x128xf32>
    %114 = math.tanh %106 : vector<2x128xf32>
    %115 = arith.select %16, %114, %113 : vector<2x128xi1>, vector<2x128xf32>
    %116 = vector.extract_strided_slice %115 {offsets = [0, 0], sizes = [2, 32], strides = [1, 1]} : vector<2x128xf32> to vector<2x32xf32>
    %117 = vector.extract_strided_slice %115 {offsets = [0, 32], sizes = [2, 32], strides = [1, 1]} : vector<2x128xf32> to vector<2x32xf32>
    %118 = vector.extract_strided_slice %115 {offsets = [0, 64], sizes = [2, 32], strides = [1, 1]} : vector<2x128xf32> to vector<2x32xf32>
    %119 = vector.extract_strided_slice %115 {offsets = [0, 96], sizes = [2, 32], strides = [1, 1]} : vector<2x128xf32> to vector<2x32xf32>
    %120 = arith.mulf %117, %79 : vector<2x32xf32>
    %121 = arith.mulf %116, %118 : vector<2x32xf32>
    %122 = arith.addf %120, %121 : vector<2x32xf32>
    %123 = math.tanh %122 : vector<2x32xf32>
    %124 = arith.mulf %119, %123 : vector<2x32xf32>
    %125 = tpu.concatenate %124, %103 in 1 : vector<2x32xf32>, vector<2x32xf32> -> vector<2x64xf32>
    %cst_30 = arith.constant dense<0.000000e+00> : vector<2x128xf32>
    %126 = tpu.matmul %125, %3, %cst_30 {dimension_numbers = #tpu.dot_dimension_numbers<[1], [0], [0], [1], [0, 0, 1, 1], [], []>} : vector<2x64xf32>, vector<64x128xf32>, vector<2x128xf32> -> vector<2x128xf32>
    %127 = vector.broadcast %4 : vector<1x128xf32> to vector<2x128xf32>
    %128 = arith.addf %126, %127 : vector<2x128xf32>
    %cst_31 = arith.constant 5.000000e-01 : f32
    %129 = vector.broadcast %cst_31 : f32 to vector<2x128xf32>
    %130 = arith.mulf %129, %128 : vector<2x128xf32>
    %131 = math.tanh %130 : vector<2x128xf32>
    %cst_32 = arith.constant 1.000000e+00 : f32
    %132 = vector.broadcast %cst_32 : f32 to vector<2x128xf32>
    %133 = arith.addf %131, %132 : vector<2x128xf32>
    %cst_33 = arith.constant 5.000000e-01 : f32
    %134 = vector.broadcast %cst_33 : f32 to vector<2x128xf32>
    %135 = arith.mulf %134, %133 : vector<2x128xf32>
    %136 = math.tanh %128 : vector<2x128xf32>
    %137 = arith.select %16, %136, %135 : vector<2x128xi1>, vector<2x128xf32>
    %138 = vector.extract_strided_slice %137 {offsets = [0, 0], sizes = [2, 32], strides = [1, 1]} : vector<2x128xf32> to vector<2x32xf32>
    %139 = vector.extract_strided_slice %137 {offsets = [0, 32], sizes = [2, 32], strides = [1, 1]} : vector<2x128xf32> to vector<2x32xf32>
    %140 = vector.extract_strided_slice %137 {offsets = [0, 64], sizes = [2, 32], strides = [1, 1]} : vector<2x128xf32> to vector<2x32xf32>
    %141 = vector.extract_strided_slice %137 {offsets = [0, 96], sizes = [2, 32], strides = [1, 1]} : vector<2x128xf32> to vector<2x32xf32>
    %142 = arith.mulf %139, %101 : vector<2x32xf32>
    %143 = arith.mulf %138, %140 : vector<2x32xf32>
    %144 = arith.addf %142, %143 : vector<2x32xf32>
    %145 = math.tanh %144 : vector<2x32xf32>
    %146 = arith.mulf %141, %145 : vector<2x32xf32>
    %147 = vector.extract_strided_slice %10 {offsets = [6, 0], sizes = [2, 128], strides = [1, 1]} : vector<16x128xf32> to vector<2x128xf32>
    %cst_34 = arith.constant dense<0.000000e+00> : vector<2x128xf32>
    %148 = tpu.matmul %124, %1, %cst_34 {dimension_numbers = #tpu.dot_dimension_numbers<[1], [0], [0], [1], [0, 0, 1, 1], [], []>} : vector<2x32xf32>, vector<32x128xf32>, vector<2x128xf32> -> vector<2x128xf32>
    %149 = arith.addf %147, %148 : vector<2x128xf32>
    %cst_35 = arith.constant 5.000000e-01 : f32
    %150 = vector.broadcast %cst_35 : f32 to vector<2x128xf32>
    %151 = arith.mulf %150, %149 : vector<2x128xf32>
    %152 = math.tanh %151 : vector<2x128xf32>
    %cst_36 = arith.constant 1.000000e+00 : f32
    %153 = vector.broadcast %cst_36 : f32 to vector<2x128xf32>
    %154 = arith.addf %152, %153 : vector<2x128xf32>
    %cst_37 = arith.constant 5.000000e-01 : f32
    %155 = vector.broadcast %cst_37 : f32 to vector<2x128xf32>
    %156 = arith.mulf %155, %154 : vector<2x128xf32>
    %157 = math.tanh %149 : vector<2x128xf32>
    %158 = arith.select %16, %157, %156 : vector<2x128xi1>, vector<2x128xf32>
    %159 = vector.extract_strided_slice %158 {offsets = [0, 0], sizes = [2, 32], strides = [1, 1]} : vector<2x128xf32> to vector<2x32xf32>
    %160 = vector.extract_strided_slice %158 {offsets = [0, 32], sizes = [2, 32], strides = [1, 1]} : vector<2x128xf32> to vector<2x32xf32>
    %161 = vector.extract_strided_slice %158 {offsets = [0, 64], sizes = [2, 32], strides = [1, 1]} : vector<2x128xf32> to vector<2x32xf32>
    %162 = vector.extract_strided_slice %158 {offsets = [0, 96], sizes = [2, 32], strides = [1, 1]} : vector<2x128xf32> to vector<2x32xf32>
    %163 = arith.mulf %160, %122 : vector<2x32xf32>
    %164 = arith.mulf %159, %161 : vector<2x32xf32>
    %165 = arith.addf %163, %164 : vector<2x32xf32>
    %166 = math.tanh %165 : vector<2x32xf32>
    %167 = arith.mulf %162, %166 : vector<2x32xf32>
    %168 = tpu.concatenate %167, %146 in 1 : vector<2x32xf32>, vector<2x32xf32> -> vector<2x64xf32>
    %cst_38 = arith.constant dense<0.000000e+00> : vector<2x128xf32>
    %169 = tpu.matmul %168, %3, %cst_38 {dimension_numbers = #tpu.dot_dimension_numbers<[1], [0], [0], [1], [0, 0, 1, 1], [], []>} : vector<2x64xf32>, vector<64x128xf32>, vector<2x128xf32> -> vector<2x128xf32>
    %170 = vector.broadcast %4 : vector<1x128xf32> to vector<2x128xf32>
    %171 = arith.addf %169, %170 : vector<2x128xf32>
    %cst_39 = arith.constant 5.000000e-01 : f32
    %172 = vector.broadcast %cst_39 : f32 to vector<2x128xf32>
    %173 = arith.mulf %172, %171 : vector<2x128xf32>
    %174 = math.tanh %173 : vector<2x128xf32>
    %cst_40 = arith.constant 1.000000e+00 : f32
    %175 = vector.broadcast %cst_40 : f32 to vector<2x128xf32>
    %176 = arith.addf %174, %175 : vector<2x128xf32>
    %cst_41 = arith.constant 5.000000e-01 : f32
    %177 = vector.broadcast %cst_41 : f32 to vector<2x128xf32>
    %178 = arith.mulf %177, %176 : vector<2x128xf32>
    %179 = math.tanh %171 : vector<2x128xf32>
    %180 = arith.select %16, %179, %178 : vector<2x128xi1>, vector<2x128xf32>
    %181 = vector.extract_strided_slice %180 {offsets = [0, 0], sizes = [2, 32], strides = [1, 1]} : vector<2x128xf32> to vector<2x32xf32>
    %182 = vector.extract_strided_slice %180 {offsets = [0, 32], sizes = [2, 32], strides = [1, 1]} : vector<2x128xf32> to vector<2x32xf32>
    %183 = vector.extract_strided_slice %180 {offsets = [0, 64], sizes = [2, 32], strides = [1, 1]} : vector<2x128xf32> to vector<2x32xf32>
    %184 = vector.extract_strided_slice %180 {offsets = [0, 96], sizes = [2, 32], strides = [1, 1]} : vector<2x128xf32> to vector<2x32xf32>
    %185 = arith.mulf %182, %144 : vector<2x32xf32>
    %186 = arith.mulf %181, %183 : vector<2x32xf32>
    %187 = arith.addf %185, %186 : vector<2x32xf32>
    %188 = math.tanh %187 : vector<2x32xf32>
    %189 = arith.mulf %184, %188 : vector<2x32xf32>
    %190 = vector.extract_strided_slice %10 {offsets = [8, 0], sizes = [2, 128], strides = [1, 1]} : vector<16x128xf32> to vector<2x128xf32>
    %cst_42 = arith.constant dense<0.000000e+00> : vector<2x128xf32>
    %191 = tpu.matmul %167, %1, %cst_42 {dimension_numbers = #tpu.dot_dimension_numbers<[1], [0], [0], [1], [0, 0, 1, 1], [], []>} : vector<2x32xf32>, vector<32x128xf32>, vector<2x128xf32> -> vector<2x128xf32>
    %192 = arith.addf %190, %191 : vector<2x128xf32>
    %cst_43 = arith.constant 5.000000e-01 : f32
    %193 = vector.broadcast %cst_43 : f32 to vector<2x128xf32>
    %194 = arith.mulf %193, %192 : vector<2x128xf32>
    %195 = math.tanh %194 : vector<2x128xf32>
    %cst_44 = arith.constant 1.000000e+00 : f32
    %196 = vector.broadcast %cst_44 : f32 to vector<2x128xf32>
    %197 = arith.addf %195, %196 : vector<2x128xf32>
    %cst_45 = arith.constant 5.000000e-01 : f32
    %198 = vector.broadcast %cst_45 : f32 to vector<2x128xf32>
    %199 = arith.mulf %198, %197 : vector<2x128xf32>
    %200 = math.tanh %192 : vector<2x128xf32>
    %201 = arith.select %16, %200, %199 : vector<2x128xi1>, vector<2x128xf32>
    %202 = vector.extract_strided_slice %201 {offsets = [0, 0], sizes = [2, 32], strides = [1, 1]} : vector<2x128xf32> to vector<2x32xf32>
    %203 = vector.extract_strided_slice %201 {offsets = [0, 32], sizes = [2, 32], strides = [1, 1]} : vector<2x128xf32> to vector<2x32xf32>
    %204 = vector.extract_strided_slice %201 {offsets = [0, 64], sizes = [2, 32], strides = [1, 1]} : vector<2x128xf32> to vector<2x32xf32>
    %205 = vector.extract_strided_slice %201 {offsets = [0, 96], sizes = [2, 32], strides = [1, 1]} : vector<2x128xf32> to vector<2x32xf32>
    %206 = arith.mulf %203, %165 : vector<2x32xf32>
    %207 = arith.mulf %202, %204 : vector<2x32xf32>
    %208 = arith.addf %206, %207 : vector<2x32xf32>
    %209 = math.tanh %208 : vector<2x32xf32>
    %210 = arith.mulf %205, %209 : vector<2x32xf32>
    %211 = tpu.concatenate %210, %189 in 1 : vector<2x32xf32>, vector<2x32xf32> -> vector<2x64xf32>
    %cst_46 = arith.constant dense<0.000000e+00> : vector<2x128xf32>
    %212 = tpu.matmul %211, %3, %cst_46 {dimension_numbers = #tpu.dot_dimension_numbers<[1], [0], [0], [1], [0, 0, 1, 1], [], []>} : vector<2x64xf32>, vector<64x128xf32>, vector<2x128xf32> -> vector<2x128xf32>
    %213 = vector.broadcast %4 : vector<1x128xf32> to vector<2x128xf32>
    %214 = arith.addf %212, %213 : vector<2x128xf32>
    %cst_47 = arith.constant 5.000000e-01 : f32
    %215 = vector.broadcast %cst_47 : f32 to vector<2x128xf32>
    %216 = arith.mulf %215, %214 : vector<2x128xf32>
    %217 = math.tanh %216 : vector<2x128xf32>
    %cst_48 = arith.constant 1.000000e+00 : f32
    %218 = vector.broadcast %cst_48 : f32 to vector<2x128xf32>
    %219 = arith.addf %217, %218 : vector<2x128xf32>
    %cst_49 = arith.constant 5.000000e-01 : f32
    %220 = vector.broadcast %cst_49 : f32 to vector<2x128xf32>
    %221 = arith.mulf %220, %219 : vector<2x128xf32>
    %222 = math.tanh %214 : vector<2x128xf32>
    %223 = arith.select %16, %222, %221 : vector<2x128xi1>, vector<2x128xf32>
    %224 = vector.extract_strided_slice %223 {offsets = [0, 0], sizes = [2, 32], strides = [1, 1]} : vector<2x128xf32> to vector<2x32xf32>
    %225 = vector.extract_strided_slice %223 {offsets = [0, 32], sizes = [2, 32], strides = [1, 1]} : vector<2x128xf32> to vector<2x32xf32>
    %226 = vector.extract_strided_slice %223 {offsets = [0, 64], sizes = [2, 32], strides = [1, 1]} : vector<2x128xf32> to vector<2x32xf32>
    %227 = vector.extract_strided_slice %223 {offsets = [0, 96], sizes = [2, 32], strides = [1, 1]} : vector<2x128xf32> to vector<2x32xf32>
    %228 = arith.mulf %225, %187 : vector<2x32xf32>
    %229 = arith.mulf %224, %226 : vector<2x32xf32>
    %230 = arith.addf %228, %229 : vector<2x32xf32>
    %231 = math.tanh %230 : vector<2x32xf32>
    %232 = arith.mulf %227, %231 : vector<2x32xf32>
    %233 = vector.extract_strided_slice %10 {offsets = [10, 0], sizes = [2, 128], strides = [1, 1]} : vector<16x128xf32> to vector<2x128xf32>
    %cst_50 = arith.constant dense<0.000000e+00> : vector<2x128xf32>
    %234 = tpu.matmul %210, %1, %cst_50 {dimension_numbers = #tpu.dot_dimension_numbers<[1], [0], [0], [1], [0, 0, 1, 1], [], []>} : vector<2x32xf32>, vector<32x128xf32>, vector<2x128xf32> -> vector<2x128xf32>
    %235 = arith.addf %233, %234 : vector<2x128xf32>
    %cst_51 = arith.constant 5.000000e-01 : f32
    %236 = vector.broadcast %cst_51 : f32 to vector<2x128xf32>
    %237 = arith.mulf %236, %235 : vector<2x128xf32>
    %238 = math.tanh %237 : vector<2x128xf32>
    %cst_52 = arith.constant 1.000000e+00 : f32
    %239 = vector.broadcast %cst_52 : f32 to vector<2x128xf32>
    %240 = arith.addf %238, %239 : vector<2x128xf32>
    %cst_53 = arith.constant 5.000000e-01 : f32
    %241 = vector.broadcast %cst_53 : f32 to vector<2x128xf32>
    %242 = arith.mulf %241, %240 : vector<2x128xf32>
    %243 = math.tanh %235 : vector<2x128xf32>
    %244 = arith.select %16, %243, %242 : vector<2x128xi1>, vector<2x128xf32>
    %245 = vector.extract_strided_slice %244 {offsets = [0, 0], sizes = [2, 32], strides = [1, 1]} : vector<2x128xf32> to vector<2x32xf32>
    %246 = vector.extract_strided_slice %244 {offsets = [0, 32], sizes = [2, 32], strides = [1, 1]} : vector<2x128xf32> to vector<2x32xf32>
    %247 = vector.extract_strided_slice %244 {offsets = [0, 64], sizes = [2, 32], strides = [1, 1]} : vector<2x128xf32> to vector<2x32xf32>
    %248 = vector.extract_strided_slice %244 {offsets = [0, 96], sizes = [2, 32], strides = [1, 1]} : vector<2x128xf32> to vector<2x32xf32>
    %249 = arith.mulf %246, %208 : vector<2x32xf32>
    %250 = arith.mulf %245, %247 : vector<2x32xf32>
    %251 = arith.addf %249, %250 : vector<2x32xf32>
    %252 = math.tanh %251 : vector<2x32xf32>
    %253 = arith.mulf %248, %252 : vector<2x32xf32>
    %254 = tpu.concatenate %253, %232 in 1 : vector<2x32xf32>, vector<2x32xf32> -> vector<2x64xf32>
    %cst_54 = arith.constant dense<0.000000e+00> : vector<2x128xf32>
    %255 = tpu.matmul %254, %3, %cst_54 {dimension_numbers = #tpu.dot_dimension_numbers<[1], [0], [0], [1], [0, 0, 1, 1], [], []>} : vector<2x64xf32>, vector<64x128xf32>, vector<2x128xf32> -> vector<2x128xf32>
    %256 = vector.broadcast %4 : vector<1x128xf32> to vector<2x128xf32>
    %257 = arith.addf %255, %256 : vector<2x128xf32>
    %cst_55 = arith.constant 5.000000e-01 : f32
    %258 = vector.broadcast %cst_55 : f32 to vector<2x128xf32>
    %259 = arith.mulf %258, %257 : vector<2x128xf32>
    %260 = math.tanh %259 : vector<2x128xf32>
    %cst_56 = arith.constant 1.000000e+00 : f32
    %261 = vector.broadcast %cst_56 : f32 to vector<2x128xf32>
    %262 = arith.addf %260, %261 : vector<2x128xf32>
    %cst_57 = arith.constant 5.000000e-01 : f32
    %263 = vector.broadcast %cst_57 : f32 to vector<2x128xf32>
    %264 = arith.mulf %263, %262 : vector<2x128xf32>
    %265 = math.tanh %257 : vector<2x128xf32>
    %266 = arith.select %16, %265, %264 : vector<2x128xi1>, vector<2x128xf32>
    %267 = vector.extract_strided_slice %266 {offsets = [0, 0], sizes = [2, 32], strides = [1, 1]} : vector<2x128xf32> to vector<2x32xf32>
    %268 = vector.extract_strided_slice %266 {offsets = [0, 32], sizes = [2, 32], strides = [1, 1]} : vector<2x128xf32> to vector<2x32xf32>
    %269 = vector.extract_strided_slice %266 {offsets = [0, 64], sizes = [2, 32], strides = [1, 1]} : vector<2x128xf32> to vector<2x32xf32>
    %270 = vector.extract_strided_slice %266 {offsets = [0, 96], sizes = [2, 32], strides = [1, 1]} : vector<2x128xf32> to vector<2x32xf32>
    %271 = arith.mulf %268, %230 : vector<2x32xf32>
    %272 = arith.mulf %267, %269 : vector<2x32xf32>
    %273 = arith.addf %271, %272 : vector<2x32xf32>
    %274 = math.tanh %273 : vector<2x32xf32>
    %275 = arith.mulf %270, %274 : vector<2x32xf32>
    %276 = vector.extract_strided_slice %10 {offsets = [12, 0], sizes = [2, 128], strides = [1, 1]} : vector<16x128xf32> to vector<2x128xf32>
    %cst_58 = arith.constant dense<0.000000e+00> : vector<2x128xf32>
    %277 = tpu.matmul %253, %1, %cst_58 {dimension_numbers = #tpu.dot_dimension_numbers<[1], [0], [0], [1], [0, 0, 1, 1], [], []>} : vector<2x32xf32>, vector<32x128xf32>, vector<2x128xf32> -> vector<2x128xf32>
    %278 = arith.addf %276, %277 : vector<2x128xf32>
    %cst_59 = arith.constant 5.000000e-01 : f32
    %279 = vector.broadcast %cst_59 : f32 to vector<2x128xf32>
    %280 = arith.mulf %279, %278 : vector<2x128xf32>
    %281 = math.tanh %280 : vector<2x128xf32>
    %cst_60 = arith.constant 1.000000e+00 : f32
    %282 = vector.broadcast %cst_60 : f32 to vector<2x128xf32>
    %283 = arith.addf %281, %282 : vector<2x128xf32>
    %cst_61 = arith.constant 5.000000e-01 : f32
    %284 = vector.broadcast %cst_61 : f32 to vector<2x128xf32>
    %285 = arith.mulf %284, %283 : vector<2x128xf32>
    %286 = math.tanh %278 : vector<2x128xf32>
    %287 = arith.select %16, %286, %285 : vector<2x128xi1>, vector<2x128xf32>
    %288 = vector.extract_strided_slice %287 {offsets = [0, 0], sizes = [2, 32], strides = [1, 1]} : vector<2x128xf32> to vector<2x32xf32>
    %289 = vector.extract_strided_slice %287 {offsets = [0, 32], sizes = [2, 32], strides = [1, 1]} : vector<2x128xf32> to vector<2x32xf32>
    %290 = vector.extract_strided_slice %287 {offsets = [0, 64], sizes = [2, 32], strides = [1, 1]} : vector<2x128xf32> to vector<2x32xf32>
    %291 = vector.extract_strided_slice %287 {offsets = [0, 96], sizes = [2, 32], strides = [1, 1]} : vector<2x128xf32> to vector<2x32xf32>
    %292 = arith.mulf %289, %251 : vector<2x32xf32>
    %293 = arith.mulf %288, %290 : vector<2x32xf32>
    %294 = arith.addf %292, %293 : vector<2x32xf32>
    %295 = math.tanh %294 : vector<2x32xf32>
    %296 = arith.mulf %291, %295 : vector<2x32xf32>
    %297 = tpu.concatenate %296, %275 in 1 : vector<2x32xf32>, vector<2x32xf32> -> vector<2x64xf32>
    %cst_62 = arith.constant dense<0.000000e+00> : vector<2x128xf32>
    %298 = tpu.matmul %297, %3, %cst_62 {dimension_numbers = #tpu.dot_dimension_numbers<[1], [0], [0], [1], [0, 0, 1, 1], [], []>} : vector<2x64xf32>, vector<64x128xf32>, vector<2x128xf32> -> vector<2x128xf32>
    %299 = vector.broadcast %4 : vector<1x128xf32> to vector<2x128xf32>
    %300 = arith.addf %298, %299 : vector<2x128xf32>
    %cst_63 = arith.constant 5.000000e-01 : f32
    %301 = vector.broadcast %cst_63 : f32 to vector<2x128xf32>
    %302 = arith.mulf %301, %300 : vector<2x128xf32>
    %303 = math.tanh %302 : vector<2x128xf32>
    %cst_64 = arith.constant 1.000000e+00 : f32
    %304 = vector.broadcast %cst_64 : f32 to vector<2x128xf32>
    %305 = arith.addf %303, %304 : vector<2x128xf32>
    %cst_65 = arith.constant 5.000000e-01 : f32
    %306 = vector.broadcast %cst_65 : f32 to vector<2x128xf32>
    %307 = arith.mulf %306, %305 : vector<2x128xf32>
    %308 = math.tanh %300 : vector<2x128xf32>
    %309 = arith.select %16, %308, %307 : vector<2x128xi1>, vector<2x128xf32>
    %310 = vector.extract_strided_slice %309 {offsets = [0, 0], sizes = [2, 32], strides = [1, 1]} : vector<2x128xf32> to vector<2x32xf32>
    %311 = vector.extract_strided_slice %309 {offsets = [0, 32], sizes = [2, 32], strides = [1, 1]} : vector<2x128xf32> to vector<2x32xf32>
    %312 = vector.extract_strided_slice %309 {offsets = [0, 64], sizes = [2, 32], strides = [1, 1]} : vector<2x128xf32> to vector<2x32xf32>
    %313 = vector.extract_strided_slice %309 {offsets = [0, 96], sizes = [2, 32], strides = [1, 1]} : vector<2x128xf32> to vector<2x32xf32>
    %314 = arith.mulf %311, %273 : vector<2x32xf32>
    %315 = arith.mulf %310, %312 : vector<2x32xf32>
    %316 = arith.addf %314, %315 : vector<2x32xf32>
    %317 = math.tanh %316 : vector<2x32xf32>
    %318 = arith.mulf %313, %317 : vector<2x32xf32>
    %319 = vector.extract_strided_slice %10 {offsets = [14, 0], sizes = [2, 128], strides = [1, 1]} : vector<16x128xf32> to vector<2x128xf32>
    %cst_66 = arith.constant dense<0.000000e+00> : vector<2x128xf32>
    %320 = tpu.matmul %296, %1, %cst_66 {dimension_numbers = #tpu.dot_dimension_numbers<[1], [0], [0], [1], [0, 0, 1, 1], [], []>} : vector<2x32xf32>, vector<32x128xf32>, vector<2x128xf32> -> vector<2x128xf32>
    %321 = arith.addf %319, %320 : vector<2x128xf32>
    %cst_67 = arith.constant 5.000000e-01 : f32
    %322 = vector.broadcast %cst_67 : f32 to vector<2x128xf32>
    %323 = arith.mulf %322, %321 : vector<2x128xf32>
    %324 = math.tanh %323 : vector<2x128xf32>
    %cst_68 = arith.constant 1.000000e+00 : f32
    %325 = vector.broadcast %cst_68 : f32 to vector<2x128xf32>
    %326 = arith.addf %324, %325 : vector<2x128xf32>
    %cst_69 = arith.constant 5.000000e-01 : f32
    %327 = vector.broadcast %cst_69 : f32 to vector<2x128xf32>
    %328 = arith.mulf %327, %326 : vector<2x128xf32>
    %329 = math.tanh %321 : vector<2x128xf32>
    %330 = arith.select %16, %329, %328 : vector<2x128xi1>, vector<2x128xf32>
    %331 = vector.extract_strided_slice %330 {offsets = [0, 0], sizes = [2, 32], strides = [1, 1]} : vector<2x128xf32> to vector<2x32xf32>
    %332 = vector.extract_strided_slice %330 {offsets = [0, 32], sizes = [2, 32], strides = [1, 1]} : vector<2x128xf32> to vector<2x32xf32>
    %333 = vector.extract_strided_slice %330 {offsets = [0, 64], sizes = [2, 32], strides = [1, 1]} : vector<2x128xf32> to vector<2x32xf32>
    %334 = vector.extract_strided_slice %330 {offsets = [0, 96], sizes = [2, 32], strides = [1, 1]} : vector<2x128xf32> to vector<2x32xf32>
    %335 = arith.mulf %332, %294 : vector<2x32xf32>
    %336 = arith.mulf %331, %333 : vector<2x32xf32>
    %337 = arith.addf %335, %336 : vector<2x32xf32>
    %338 = math.tanh %337 : vector<2x32xf32>
    %339 = arith.mulf %334, %338 : vector<2x32xf32>
    %340 = tpu.concatenate %339, %318 in 1 : vector<2x32xf32>, vector<2x32xf32> -> vector<2x64xf32>
    %cst_70 = arith.constant dense<0.000000e+00> : vector<2x128xf32>
    %341 = tpu.matmul %340, %3, %cst_70 {dimension_numbers = #tpu.dot_dimension_numbers<[1], [0], [0], [1], [0, 0, 1, 1], [], []>} : vector<2x64xf32>, vector<64x128xf32>, vector<2x128xf32> -> vector<2x128xf32>
    %342 = vector.broadcast %4 : vector<1x128xf32> to vector<2x128xf32>
    %343 = arith.addf %341, %342 : vector<2x128xf32>
    %cst_71 = arith.constant 5.000000e-01 : f32
    %344 = vector.broadcast %cst_71 : f32 to vector<2x128xf32>
    %345 = arith.mulf %344, %343 : vector<2x128xf32>
    %346 = math.tanh %345 : vector<2x128xf32>
    %cst_72 = arith.constant 1.000000e+00 : f32
    %347 = vector.broadcast %cst_72 : f32 to vector<2x128xf32>
    %348 = arith.addf %346, %347 : vector<2x128xf32>
    %cst_73 = arith.constant 5.000000e-01 : f32
    %349 = vector.broadcast %cst_73 : f32 to vector<2x128xf32>
    %350 = arith.mulf %349, %348 : vector<2x128xf32>
    %351 = math.tanh %343 : vector<2x128xf32>
    %352 = arith.select %16, %351, %350 : vector<2x128xi1>, vector<2x128xf32>
    %353 = vector.extract_strided_slice %352 {offsets = [0, 0], sizes = [2, 32], strides = [1, 1]} : vector<2x128xf32> to vector<2x32xf32>
    %354 = vector.extract_strided_slice %352 {offsets = [0, 32], sizes = [2, 32], strides = [1, 1]} : vector<2x128xf32> to vector<2x32xf32>
    %355 = vector.extract_strided_slice %352 {offsets = [0, 64], sizes = [2, 32], strides = [1, 1]} : vector<2x128xf32> to vector<2x32xf32>
    %356 = vector.extract_strided_slice %352 {offsets = [0, 96], sizes = [2, 32], strides = [1, 1]} : vector<2x128xf32> to vector<2x32xf32>
    %357 = arith.mulf %354, %316 : vector<2x32xf32>
    %358 = arith.mulf %353, %355 : vector<2x32xf32>
    %359 = arith.addf %357, %358 : vector<2x32xf32>
    %360 = math.tanh %359 : vector<2x32xf32>
    %361 = arith.mulf %356, %360 : vector<2x32xf32>
    %cst_74 = arith.constant 0.000000e+00 : f32
    %362 = vector.broadcast %cst_74 : f32 to vector<2x32xf32>
    %363 = arith.maximumf %361, %362 : vector<2x32xf32>
    %364 = vector.broadcast %5 : vector<1x32xf32> to vector<2x32xf32>
    %365 = arith.mulf %363, %364 : vector<2x32xf32>
    %cst_75 = arith.constant dense<0.000000e+00> : vector<2xf32>
    %366 = vector.multi_reduction <add>, %365, %cst_75 [1] : vector<2x32xf32> to vector<2xf32>
    %367 = vector.shape_cast %366 : vector<2xf32> to vector<2x1xf32>
    %368 = vector.broadcast %6 : vector<1x1xf32> to vector<2x1xf32>
    %369 = arith.addf %367, %368 : vector<2x1xf32>
    %c0_76 = arith.constant 0 : index
    %c0_77 = arith.constant 0 : index
    %370 = vector.load %arg2[%c0_76, %c0_77] : memref<2x1xf32, #tpu.memory_space<vmem>>, vector<2x1xf32>
    tpu.vector_store %arg2[%c0_76, %c0_77], %369 {strides = array<i32>} : memref<2x1xf32, #tpu.memory_space<vmem>>, vector<2x1xf32>,
    return
  }
}

</mosaic_0001>

<llo_original>
// kernel: tpu_custom_call.1
$region0: #{tpu_custom_call.1}
  #allocation0 [shape = 'u32[]', space=smem, size = 0x4, offset = 0x4, fixed_abs, tag = 'smem constant byte address 0x4 - core index']
  #allocation1 [shape = 'u32[144,128]{1,0:T(1,128)}', space=vmem, size = 0x12000, scoped, tag = 'internal scratch']
  %s0 = inlined_call_operand.vmem [shape: f32[16,8], index: 0, kind: input, shape index: {}]
  %s1 = inlined_call_operand.hbm [shape: f32[128,128], index: 1, kind: input, shape index: {}]
  %s2 = inlined_call_operand.vmem [shape: f32[2,1], index: 2, kind: output, shape index: {}]
  %s3 = sld [smem:[#allocation0]]
  $region22: #{tpu_custom_call.1} parent=0
    _
  %s5 = ssub.s32 1, %s3
  %s6 = scalar_select 0, %s5, %s3
  $region1: #{tpu_custom_call.1} parent=0
    #allocation2 [shape = 'u8[65536]{0}', space=vmem, size = 0x10000, scoped, tag = 'input window, operand 1, single buffered']
    #allocation3 [shape = 's32[1]{0}', space=sflag, size = 0x4, scoped, tag = 'scoped memory for tpu_custom_call.1']
    %7 = vsyncpa [#allocation3], 0
    // Predicated region
    $region2: #{tpu_custom_call.1} parent=1 // pred_check
      _
    $region3: #{tpu_custom_call.1} parent=1 // pred_check_branch
      %9 = sbr.rel (0) target = $region5
    $region4: #{tpu_custom_call.1} parent=1 // pred_region
      _
    $region5: #{tpu_custom_call.1} parent=1 // pred_fallthru
      _
    // Predicated region
    $region6: #{tpu_custom_call.1} parent=1 // pred_check
      _
    $region7: #{tpu_custom_call.1} parent=1 // pred_check_branch
      %11 = sbr.rel (0) target = $region9
    $region8: #{tpu_custom_call.1} parent=1 // pred_region
      %s13 = ssub.s32 2048, 2048
      %14 = vsyncadd [#allocation3], %s13
      %s15 = sshll.u32 [#allocation2], 4
      %s16 = int_to_ptr.vmem [resolvable:$true] %s15
      %21 = dma.hbm_to_vmem [thread:$0]  %s1, 2048, %s16, [#allocation3], 128, 128, 8
    $region9: #{tpu_custom_call.1} parent=1 // pred_fallthru
      _
    // Predicated region
    $region10: #{tpu_custom_call.1} parent=1 // pred_check
      _
    $region11: #{tpu_custom_call.1} parent=1 // pred_check_branch
      %23 = sbr.rel (0) target = $region13
    $region12: #{tpu_custom_call.1} parent=1 // pred_region
      %24 = dma.done [#allocation3], 2048
    $region13: #{tpu_custom_call.1} parent=1 // pred_fallthru
      _
    %v25 = vld [vmem:[#allocation2] sm:$0xff]
    %v26 = vld [vmem:[#allocation2 + $0x8] sm:$0xff]
    %v27 = vld [vmem:[#allocation2 + $0x10] sm:$0xff]
    %v28 = vld [vmem:[#allocation2 + $0x18] sm:$0xff]
    %v29 = vld [vmem:[#allocation2 + $0x20] sm:$0xff]
    %v30 = vld [vmem:[#allocation2 + $0x28] sm:$0x1]
    %v31 = vld [vmem:[#allocation2 + $0x30] sm:$0xff]
    %v32 = vld [vmem:[#allocation2 + $0x38] sm:$0xff]
    %v33 = vld [vmem:[#allocation2 + $0x40] sm:$0xff]
    %v34 = vld [vmem:[#allocation2 + $0x48] sm:$0xff]
    %v35 = vld [vmem:[#allocation2 + $0x50] sm:$0xff]
    %v36 = vld [vmem:[#allocation2 + $0x58] sm:$0xff]
    %v37 = vld [vmem:[#allocation2 + $0x60] sm:$0xff]
    %v38 = vld [vmem:[#allocation2 + $0x68] sm:$0xff]
    %v39 = vld [vmem:[#allocation2 + $0x70] sm:$0x1]
    %v40 = vld [vmem:[#allocation2 + $0x78] sm:$0x1]
    %v41 = vld [vmem:[#allocation2 + $0x79] sm:$0x1]
    %v42 = vld [vmem:[%s0] sm:$0xff]
    %v43 = vld [vmem:[%s0 + $0x8] sm:$0xff]
    %v44 = vlaneseq
    %v45 = vshrl.u32 %v44, 7
    %v46 = vsub.s32 0, %v45
    %v47 = vrot.slane %v30, %v46
    %vm48 = vcmask 64512
    %v50 = vsel %vm48, %v42, 0
    %v53 = vsel %vm48, %v43, 0
    %55 = vmatprep.subr.mxu0 0.0
    %56 = vmatpush1.msra.mxu0 %v25
    %57 = vmatprep.subr.mxu0 0.0
    %58 = vmatpush1.msra.mxu0 0.0
    %59 = vmatprep.subr.mxu0 0.0
    %60 = vmatpush1.msra.mxu0 0.0
    %61 = vmatprep.subr.mxu0 0.0
    %62 = vmatpush1.msra.mxu0 0.0
    %63 = vmatprep.subr.mxu0 0.0
    %64 = vmatpush1.msra.mxu0 0.0
    %65 = vmatprep.subr.mxu0 0.0
    %66 = vmatpush1.msra.mxu0 0.0
    %67 = vmatprep.subr.mxu0 0.0
    %68 = vmatpush1.msra.mxu0 0.0
    %69 = vmatprep.subr.mxu0 0.0
    %70 = vmatpush1.msra.mxu0 0.0
    %71 = vmatprep.subr.mxu0 0.0
    %72 = vmatpush1.msra.mxu0 0.0
    %73 = vmatprep.subr.mxu0 0.0
    %74 = vmatpush1.msra.mxu0 0.0
    %75 = vmatprep.subr.mxu0 0.0
    %76 = vmatpush1.msra.mxu0 0.0
    %77 = vmatprep.subr.mxu0 0.0
    %78 = vmatpush1.msra.mxu0 0.0
    %79 = vmatprep.subr.mxu0 0.0
    %80 = vmatpush1.msra.mxu0 0.0
    %81 = vmatprep.subr.mxu0 0.0
    %82 = vmatpush1.msra.mxu0 0.0
    %83 = vmatprep.subr.mxu0 0.0
    %84 = vmatpush1.msra.mxu0 0.0
    %85 = vmatprep.subr.mxu0 0.0
    %86 = vmatpush1.msra.mxu0 0.0
    %87 = vmatprep.subr.mxu0 0.0
    %88 = vmatpush1.msra.mxu0 0.0
    %89 = vmatprep.subr.mxu0 0.0
    %90 = vmatpush1.msra.mxu0 0.0
    %91 = vmatprep.subr.mxu0 0.0
    %92 = vmatpush1.msra.mxu0 0.0
    %93 = vmatprep.subr.mxu0 0.0
    %94 = vmatpush1.msra.mxu0 0.0
    %95 = vmatprep.subr.mxu0 0.0
    %96 = vmatpush1.msra.mxu0 0.0
    %97 = vmatprep.subr.mxu0 0.0
    %98 = vmatpush1.msra.mxu0 0.0
    %99 = vmatprep.subr.mxu0 0.0
    %100 = vmatpush1.msra.mxu0 0.0
    %101 = vmatprep.subr.mxu0 0.0
    %102 = vmatpush1.msra.mxu0 0.0
    %103 = vmatprep.subr.mxu0 0.0
    %104 = vmatpush1.msra.mxu0 0.0
    %105 = vmatprep.subr.mxu0 0.0
    %106 = vmatpush1.msra.mxu0 0.0
    %107 = vmatprep.subr.mxu0 0.0
    %108 = vmatpush1.msra.mxu0 0.0
    %109 = vmatprep.subr.mxu0 0.0
    %110 = vmatpush1.msra.mxu0 0.0
    %111 = vmatprep.subr.mxu0 0.0
    %112 = vmatpush1.msra.mxu0 0.0
    %113 = vmatprep.subr.mxu0 0.0
    %114 = vmatpush1.msra.mxu0 0.0
    %115 = vmatprep.subr.mxu0 0.0
    %116 = vmatpush1.msra.mxu0 0.0
    %117 = vmatprep.subr.mxu0 0.0
    %118 = vmatpush1.msra.mxu0 0.0
    %119 = vmatprep.mubr.f32.mxu0 0.0
    %120 = vmatmul.mubr.f32.gmra.mrb[0].mxu0 %v50
    %v121 = vpop.f32.mrb[0].mxu0
    %v122 = vadd.f32 %v47, %v121
    %v123 = vpop.f32.mrb[0].mxu0
    %124 = vmatprep.mubr.f32.mxu0 0.0
    %125 = vmatmul.mubr.f32.gmra.mrb[0].mxu0 %v53
    %v126 = vpop.f32.mrb[0].mxu0
    %v127 = vadd.f32 %v47, %v126
    %v128 = vpop.f32.mrb[0].mxu0
    %129 = vdwg.mxu0
    %v130 = vlaneseq
    %v131 = vand.u32 %v130, 127
    %vm132 = vcmp.ge.s32.totalorder %v131, 64
    %vm133 = vcmp.lt.s32.totalorder %v131, 96
    %vm134 = vmand %vm132, %vm133
    %vm135 = vcmask 261120
    %v137 = vsel %vm135, 0.0, 0
    %139 = vmatprep.subr.mxu0 0.0
    %140 = vmatpush1.msra.mxu0 %v26
    %141 = vmatprep.subr.mxu0 0.0
    %142 = vmatpush1.msra.mxu0 %v27
    %143 = vmatprep.subr.mxu0 0.0
    %144 = vmatpush1.msra.mxu0 %v28
    %145 = vmatprep.subr.mxu0 0.0
    %146 = vmatpush1.msra.mxu0 %v29
    %147 = vmatprep.subr.mxu0 0.0
    %148 = vmatpush1.msra.mxu0 0.0
    %149 = vmatprep.subr.mxu0 0.0
    %150 = vmatpush1.msra.mxu0 0.0
    %151 = vmatprep.subr.mxu0 0.0
    %152 = vmatpush1.msra.mxu0 0.0
    %153 = vmatprep.subr.mxu0 0.0
    %154 = vmatpush1.msra.mxu0 0.0
    %155 = vmatprep.subr.mxu0 0.0
    %156 = vmatpush1.msra.mxu0 0.0
    %157 = vmatprep.subr.mxu0 0.0
    %158 = vmatpush1.msra.mxu0 0.0
    %159 = vmatprep.subr.mxu0 0.0
    %160 = vmatpush1.msra.mxu0 0.0
    %161 = vmatprep.subr.mxu0 0.0
    %162 = vmatpush1.msra.mxu0 0.0
    %163 = vmatprep.subr.mxu0 0.0
    %164 = vmatpush1.msra.mxu0 0.0
    %165 = vmatprep.subr.mxu0 0.0
    %166 = vmatpush1.msra.mxu0 0.0
    %167 = vmatprep.subr.mxu0 0.0
    %168 = vmatpush1.msra.mxu0 0.0
    %169 = vmatprep.subr.mxu0 0.0
    %170 = vmatpush1.msra.mxu0 0.0
    %171 = vmatprep.subr.mxu0 0.0
    %172 = vmatpush1.msra.mxu0 0.0
    %173 = vmatprep.subr.mxu0 0.0
    %174 = vmatpush1.msra.mxu0 0.0
    %175 = vmatprep.subr.mxu0 0.0
    %176 = vmatpush1.msra.mxu0 0.0
    %177 = vmatprep.subr.mxu0 0.0
    %178 = vmatpush1.msra.mxu0 0.0
    %179 = vmatprep.subr.mxu0 0.0
    %180 = vmatpush1.msra.mxu0 0.0
    %181 = vmatprep.subr.mxu0 0.0
    %182 = vmatpush1.msra.mxu0 0.0
    %183 = vmatprep.subr.mxu0 0.0
    %184 = vmatpush1.msra.mxu0 0.0
    %185 = vmatprep.subr.mxu0 0.0
    %186 = vmatpush1.msra.mxu0 0.0
    %187 = vmatprep.subr.mxu0 0.0
    %188 = vmatpush1.msra.mxu0 0.0
    %189 = vmatprep.subr.mxu0 0.0
    %190 = vmatpush1.msra.mxu0 0.0
    %191 = vmatprep.subr.mxu0 0.0
    %192 = vmatpush1.msra.mxu0 0.0
    %193 = vmatprep.subr.mxu0 0.0
    %194 = vmatpush1.msra.mxu0 0.0
    %195 = vmatprep.subr.mxu0 0.0
    %196 = vmatpush1.msra.mxu0 0.0
    %197 = vmatprep.subr.mxu0 0.0
    %198 = vmatpush1.msra.mxu0 0.0
    %199 = vmatprep.subr.mxu0 0.0
    %200 = vmatpush1.msra.mxu0 0.0
    %201 = vmatprep.subr.mxu0 0.0
    %202 = vmatpush1.msra.mxu0 0.0
    %203 = vmatprep.mubr.f32.mxu0 0.0
    %204 = vmatmul.mubr.f32.gmra.mrb[0].mxu0 %v137
    %v205 = vpop.f32.mrb[0].mxu0
    %v206 = vadd.f32 0.0, %v205
    %v207 = vpop.f32.mrb[0].mxu0
    %208 = vdwg.mxu0
    %v209 = vadd.f32 %v122, %v206
    %v210 = vmul.f32 %v209, 0.5
    %v211 = vtanh.pop %v210
    %v212 = vadd.f32 %v211, 1.0
    %v213 = vmul.f32 %v212, 0.5
    %v214 = vtanh.pop %v209
    %v215 = vsel %vm134, %v214, %v213
    %v216 = vmul.f32 %v215, 0.0
    %218 = vrot.lane.b32.xlu0 %v215, 64
    %v219 = vpop.permute.xlu0 %218
    %v221 = vmul.f32 %v215, %v219
    %223 = vrot.lane.b32.xlu0 %v221, 32
    %v224 = vpop.permute.xlu0 %223
    %v226 = vadd.f32 %v216, %v224
    %v227 = vtanh.pop %v226
    %229 = vrot.lane.b32.xlu0 %v227, 64
    %v230 = vpop.permute.xlu0 %229
    %v232 = vmul.f32 %v215, %v230
    %234 = vrot.lane.b32.xlu0 %v232, 32
    %v235 = vpop.permute.xlu0 %234
    %v237 = vsel %vm135, %v235, 0.0
    %v238 = vlaneseq
    %v239 = vshrl.u32 %v238, 7
    %v240 = vsub.s32 0, %v239
    %v241 = vrot.slane %v39, %v240
    %vm242 = vcmask 523264
    %v244 = vsel %vm242, %v237, 0
    %246 = vmatprep.subr.mxu0 0.0
    %247 = vmatpush1.msra.mxu0 %v31
    %248 = vmatprep.subr.mxu0 0.0
    %249 = vmatpush1.msra.mxu0 %v32
    %250 = vmatprep.subr.mxu0 0.0
    %251 = vmatpush1.msra.mxu0 %v33
    %252 = vmatprep.subr.mxu0 0.0
    %253 = vmatpush1.msra.mxu0 %v34
    %254 = vmatprep.subr.mxu0 0.0
    %255 = vmatpush1.msra.mxu0 %v35
    %256 = vmatprep.subr.mxu0 0.0
    %257 = vmatpush1.msra.mxu0 %v36
    %258 = vmatprep.subr.mxu0 0.0
    %259 = vmatpush1.msra.mxu0 %v37
    %260 = vmatprep.subr.mxu0 0.0
    %261 = vmatpush1.msra.mxu0 %v38
    %262 = vmatprep.subr.mxu0 0.0
    %263 = vmatpush1.msra.mxu0 0.0
    %264 = vmatprep.subr.mxu0 0.0
    %265 = vmatpush1.msra.mxu0 0.0
    %266 = vmatprep.subr.mxu0 0.0
    %267 = vmatpush1.msra.mxu0 0.0
    %268 = vmatprep.subr.mxu0 0.0
    %269 = vmatpush1.msra.mxu0 0.0
    %270 = vmatprep.subr.mxu0 0.0
    %271 = vmatpush1.msra.mxu0 0.0
    %272 = vmatprep.subr.mxu0 0.0
    %273 = vmatpush1.msra.mxu0 0.0
    %274 = vmatprep.subr.mxu0 0.0
    %275 = vmatpush1.msra.mxu0 0.0
    %276 = vmatprep.subr.mxu0 0.0
    %277 = vmatpush1.msra.mxu0 0.0
    %278 = vmatprep.subr.mxu0 0.0
    %279 = vmatpush1.msra.mxu0 0.0
    %280 = vmatprep.subr.mxu0 0.0
    %281 = vmatpush1.msra.mxu0 0.0
    %282 = vmatprep.subr.mxu0 0.0
    %283 = vmatpush1.msra.mxu0 0.0
    %284 = vmatprep.subr.mxu0 0.0
    %285 = vmatpush1.msra.mxu0 0.0
    %286 = vmatprep.subr.mxu0 0.0
    %287 = vmatpush1.msra.mxu0 0.0
    %288 = vmatprep.subr.mxu0 0.0
    %289 = vmatpush1.msra.mxu0 0.0
    %290 = vmatprep.subr.mxu0 0.0
    %291 = vmatpush1.msra.mxu0 0.0
    %292 = vmatprep.subr.mxu0 0.0
    %293 = vmatpush1.msra.mxu0 0.0
    %294 = vmatprep.subr.mxu0 0.0
    %295 = vmatpush1.msra.mxu0 0.0
    %296 = vmatprep.subr.mxu0 0.0
    %297 = vmatpush1.msra.mxu0 0.0
    %298 = vmatprep.subr.mxu0 0.0
    %299 = vmatpush1.msra.mxu0 0.0
    %300 = vmatprep.subr.mxu0 0.0
    %301 = vmatpush1.msra.mxu0 0.0
    %302 = vmatprep.subr.mxu0 0.0
    %303 = vmatpush1.msra.mxu0 0.0
    %304 = vmatprep.subr.mxu0 0.0
    %305 = vmatpush1.msra.mxu0 0.0
    %306 = vmatprep.subr.mxu0 0.0
    %307 = vmatpush1.msra.mxu0 0.0
    %308 = vmatprep.subr.mxu0 0.0
    %309 = vmatpush1.msra.mxu0 0.0
    %310 = vmatprep.mubr.f32.mxu0 0.0
    %311 = vmatmul.mubr.f32.gmra.mrb[0].mxu0 %v244
    %v312 = vpop.f32.mrb[0].mxu0
    %v313 = vadd.f32 %v241, %v312
    %v314 = vpop.f32.mrb[0].mxu0
    %315 = vdwg.mxu0
    %v316 = vmul.f32 %v313, 0.5
    %v317 = vtanh.pop %v316
    %v318 = vadd.f32 %v317, 1.0
    %v319 = vmul.f32 %v318, 0.5
    %v320 = vtanh.pop %v313
    %v321 = vsel %vm134, %v320, %v319
    %v322 = vmul.f32 %v321, 0.0
    %324 = vrot.lane.b32.xlu0 %v321, 64
    %v325 = vpop.permute.xlu0 %324
    %v327 = vmul.f32 %v321, %v325
    %329 = vrot.lane.b32.xlu0 %v327, 32
    %v330 = vpop.permute.xlu0 %329
    %v332 = vadd.f32 %v322, %v330
    %v333 = vtanh.pop %v332
    %335 = vrot.lane.b32.xlu0 %v333, 64
    %v336 = vpop.permute.xlu0 %335
    %v338 = vmul.f32 %v321, %v336
    %v339 = vsel %vm135, %v235, 0
    %341 = vmatprep.subr.mxu0 0.0
    %342 = vmatpush1.msra.mxu0 %v26
    %343 = vmatprep.subr.mxu0 0.0
    %344 = vmatpush1.msra.mxu0 %v27
    %345 = vmatprep.subr.mxu0 0.0
    %346 = vmatpush1.msra.mxu0 %v28
    %347 = vmatprep.subr.mxu0 0.0
    %348 = vmatpush1.msra.mxu0 %v29
    %349 = vmatprep.subr.mxu0 0.0
    %350 = vmatpush1.msra.mxu0 0.0
    %351 = vmatprep.subr.mxu0 0.0
    %352 = vmatpush1.msra.mxu0 0.0
    %353 = vmatprep.subr.mxu0 0.0
    %354 = vmatpush1.msra.mxu0 0.0
    %355 = vmatprep.subr.mxu0 0.0
    %356 = vmatpush1.msra.mxu0 0.0
    %357 = vmatprep.subr.mxu0 0.0
    %358 = vmatpush1.msra.mxu0 0.0
    %359 = vmatprep.subr.mxu0 0.0
    %360 = vmatpush1.msra.mxu0 0.0
    %361 = vmatprep.subr.mxu0 0.0
    %362 = vmatpush1.msra.mxu0 0.0
    %363 = vmatprep.subr.mxu0 0.0
    %364 = vmatpush1.msra.mxu0 0.0
    %365 = vmatprep.subr.mxu0 0.0
    %366 = vmatpush1.msra.mxu0 0.0
    %367 = vmatprep.subr.mxu0 0.0
    %368 = vmatpush1.msra.mxu0 0.0
    %369 = vmatprep.subr.mxu0 0.0
    %370 = vmatpush1.msra.mxu0 0.0
    %371 = vmatprep.subr.mxu0 0.0
    %372 = vmatpush1.msra.mxu0 0.0
    %373 = vmatprep.subr.mxu0 0.0
    %374 = vmatpush1.msra.mxu0 0.0
    %375 = vmatprep.subr.mxu0 0.0
    %376 = vmatpush1.msra.mxu0 0.0
    %377 = vmatprep.subr.mxu0 0.0
    %378 = vmatpush1.msra.mxu0 0.0
    %379 = vmatprep.subr.mxu0 0.0
    %380 = vmatpush1.msra.mxu0 0.0
    %381 = vmatprep.subr.mxu0 0.0
    %382 = vmatpush1.msra.mxu0 0.0
    %383 = vmatprep.subr.mxu0 0.0
    %384 = vmatpush1.msra.mxu0 0.0
    %385 = vmatprep.subr.mxu0 0.0
    %386 = vmatpush1.msra.mxu0 0.0
    %387 = vmatprep.subr.mxu0 0.0
    %388 = vmatpush1.msra.mxu0 0.0
    %389 = vmatprep.subr.mxu0 0.0
    %390 = vmatpush1.msra.mxu0 0.0
    %391 = vmatprep.subr.mxu0 0.0
    %392 = vmatpush1.msra.mxu0 0.0
    %393 = vmatprep.subr.mxu0 0.0
    %394 = vmatpush1.msra.mxu0 0.0
    %395 = vmatprep.subr.mxu0 0.0
    %396 = vmatpush1.msra.mxu0 0.0
    %397 = vmatprep.subr.mxu0 0.0
    %398 = vmatpush1.msra.mxu0 0.0
    %399 = vmatprep.subr.mxu0 0.0
    %400 = vmatpush1.msra.mxu0 0.0
    %401 = vmatprep.subr.mxu0 0.0
    %402 = vmatpush1.msra.mxu0 0.0
    %403 = vmatprep.subr.mxu0 0.0
    %404 = vmatpush1.msra.mxu0 0.0
    %405 = vmatprep.mubr.f32.mxu0 0.0
    %406 = vmatmul.mubr.f32.gmra.mrb[0].mxu0 %v339
    %v407 = vpop.f32.mrb[0].mxu0
    %v408 = vadd.f32 0.0, %v407
    %v409 = vpop.f32.mrb[0].mxu0
    %410 = vdwg.mxu0
    %v412 = vrot.slane %v408, 6
    %v414 = vadd.f32 %v122, %v412
    %v415 = vmul.f32 %v414, 0.5
    %v416 = vtanh.pop %v415
    %v417 = vadd.f32 %v416, 1.0
    %v418 = vmul.f32 %v417, 0.5
    %v419 = vtanh.pop %v414
    %v420 = vsel %vm134, %v419, %v418
    %v422 = vrot.slane %v226, 6
    %v424 = vmul.f32 %v420, %v422
    %426 = vrot.lane.b32.xlu0 %v420, 64
    %v427 = vpop.permute.xlu0 %426
    %v429 = vmul.f32 %v420, %v427
    %431 = vrot.lane.b32.xlu0 %v429, 32
    %v432 = vpop.permute.xlu0 %431
    %v434 = vadd.f32 %v424, %v432
    %v435 = vtanh.pop %v434
    %437 = vrot.lane.b32.xlu0 %v435, 64
    %v438 = vpop.permute.xlu0 %437
    %v440 = vmul.f32 %v420, %v438
    %442 = vrot.lane.b32.xlu0 %v440, 32
    %v443 = vpop.permute.xlu0 %442
    %v446 = vrot.slane %v338, 6
    %447 = vrot.lane.b32.xlu0 %v446, 64
    %v448 = vpop.permute.xlu0 %447
    %v450 = vsel %vm135, %v443, %v448
    %v452 = vrot.slane %v450, 2
    %v453 = vsel %vm242, %v452, 0
    %455 = vmatprep.subr.mxu0 0.0
    %456 = vmatpush1.msra.mxu0 %v31
    %457 = vmatprep.subr.mxu0 0.0
    %458 = vmatpush1.msra.mxu0 %v32
    %459 = vmatprep.subr.mxu0 0.0
    %460 = vmatpush1.msra.mxu0 %v33
    %461 = vmatprep.subr.mxu0 0.0
    %462 = vmatpush1.msra.mxu0 %v34
    %463 = vmatprep.subr.mxu0 0.0
    %464 = vmatpush1.msra.mxu0 %v35
    %465 = vmatprep.subr.mxu0 0.0
    %466 = vmatpush1.msra.mxu0 %v36
    %467 = vmatprep.subr.mxu0 0.0
    %468 = vmatpush1.msra.mxu0 %v37
    %469 = vmatprep.subr.mxu0 0.0
    %470 = vmatpush1.msra.mxu0 %v38
    %471 = vmatprep.subr.mxu0 0.0
    %472 = vmatpush1.msra.mxu0 0.0
    %473 = vmatprep.subr.mxu0 0.0
    %474 = vmatpush1.msra.mxu0 0.0
    %475 = vmatprep.subr.mxu0 0.0
    %476 = vmatpush1.msra.mxu0 0.0
    %477 = vmatprep.subr.mxu0 0.0
    %478 = vmatpush1.msra.mxu0 0.0
    %479 = vmatprep.subr.mxu0 0.0
    %480 = vmatpush1.msra.mxu0 0.0
    %481 = vmatprep.subr.mxu0 0.0
    %482 = vmatpush1.msra.mxu0 0.0
    %483 = vmatprep.subr.mxu0 0.0
    %484 = vmatpush1.msra.mxu0 0.0
    %485 = vmatprep.subr.mxu0 0.0
    %486 = vmatpush1.msra.mxu0 0.0
    %487 = vmatprep.subr.mxu0 0.0
    %488 = vmatpush1.msra.mxu0 0.0
    %489 = vmatprep.subr.mxu0 0.0
    %490 = vmatpush1.msra.mxu0 0.0
    %491 = vmatprep.subr.mxu0 0.0
    %492 = vmatpush1.msra.mxu0 0.0
    %493 = vmatprep.subr.mxu0 0.0
    %494 = vmatpush1.msra.mxu0 0.0
    %495 = vmatprep.subr.mxu0 0.0
    %496 = vmatpush1.msra.mxu0 0.0
    %497 = vmatprep.subr.mxu0 0.0
    %498 = vmatpush1.msra.mxu0 0.0
    %499 = vmatprep.subr.mxu0 0.0
    %500 = vmatpush1.msra.mxu0 0.0
    %501 = vmatprep.subr.mxu0 0.0
    %502 = vmatpush1.msra.mxu0 0.0
    %503 = vmatprep.subr.mxu0 0.0
    %504 = vmatpush1.msra.mxu0 0.0
    %505 = vmatprep.subr.mxu0 0.0
    %506 = vmatpush1.msra.mxu0 0.0
    %507 = vmatprep.subr.mxu0 0.0
    %508 = vmatpush1.msra.mxu0 0.0
    %509 = vmatprep.subr.mxu0 0.0
    %510 = vmatpush1.msra.mxu0 0.0
    %511 = vmatprep.subr.mxu0 0.0
    %512 = vmatpush1.msra.mxu0 0.0
    %513 = vmatprep.subr.mxu0 0.0
    %514 = vmatpush1.msra.mxu0 0.0
    %515 = vmatprep.subr.mxu0 0.0
    %516 = vmatpush1.msra.mxu0 0.0
    %517 = vmatprep.subr.mxu0 0.0
    %518 = vmatpush1.msra.mxu0 0.0
    %519 = vmatprep.mubr.f32.mxu0 0.0
    %520 = vmatmul.mubr.f32.gmra.mrb[0].mxu0 %v453
    %v521 = vpop.f32.mrb[0].mxu0
    %v522 = vadd.f32 %v241, %v521
    %v523 = vpop.f32.mrb[0].mxu0
    %524 = vdwg.mxu0
    %v525 = vmul.f32 %v522, 0.5
    %v526 = vtanh.pop %v525
    %v527 = vadd.f32 %v526, 1.0
    %v528 = vmul.f32 %v527, 0.5
    %v529 = vtanh.pop %v522
    %v530 = vsel %vm134, %v529, %v528
    %v531 = vmul.f32 %v530, %v332
    %533 = vrot.lane.b32.xlu0 %v530, 64
    %v534 = vpop.permute.xlu0 %533
    %v536 = vmul.f32 %v530, %v534
    %538 = vrot.lane.b32.xlu0 %v536, 32
    %v539 = vpop.permute.xlu0 %538
    %v541 = vadd.f32 %v531, %v539
    %v542 = vtanh.pop %v541
    %544 = vrot.lane.b32.xlu0 %v542, 64
    %v545 = vpop.permute.xlu0 %544
    %v547 = vmul.f32 %v530, %v545
    %v548 = vrot.slane %v440, 2
    %549 = vrot.lane.b32.xlu0 %v548, 32
    %v550 = vpop.permute.xlu0 %549
    %v551 = vsel %vm135, %v550, 0
    %553 = vmatprep.subr.mxu0 0.0
    %554 = vmatpush1.msra.mxu0 %v26
    %555 = vmatprep.subr.mxu0 0.0
    %556 = vmatpush1.msra.mxu0 %v27
    %557 = vmatprep.subr.mxu0 0.0
    %558 = vmatpush1.msra.mxu0 %v28
    %559 = vmatprep.subr.mxu0 0.0
    %560 = vmatpush1.msra.mxu0 %v29
    %561 = vmatprep.subr.mxu0 0.0
    %562 = vmatpush1.msra.mxu0 0.0
    %563 = vmatprep.subr.mxu0 0.0
    %564 = vmatpush1.msra.mxu0 0.0
    %565 = vmatprep.subr.mxu0 0.0
    %566 = vmatpush1.msra.mxu0 0.0
    %567 = vmatprep.subr.mxu0 0.0
    %568 = vmatpush1.msra.mxu0 0.0
    %569 = vmatprep.subr.mxu0 0.0
    %570 = vmatpush1.msra.mxu0 0.0
    %571 = vmatprep.subr.mxu0 0.0
    %572 = vmatpush1.msra.mxu0 0.0
    %573 = vmatprep.subr.mxu0 0.0
    %574 = vmatpush1.msra.mxu0 0.0
    %575 = vmatprep.subr.mxu0 0.0
    %576 = vmatpush1.msra.mxu0 0.0
    %577 = vmatprep.subr.mxu0 0.0
    %578 = vmatpush1.msra.mxu0 0.0
    %579 = vmatprep.subr.mxu0 0.0
    %580 = vmatpush1.msra.mxu0 0.0
    %581 = vmatprep.subr.mxu0 0.0
    %582 = vmatpush1.msra.mxu0 0.0
    %583 = vmatprep.subr.mxu0 0.0
    %584 = vmatpush1.msra.mxu0 0.0
    %585 = vmatprep.subr.mxu0 0.0
    %586 = vmatpush1.msra.mxu0 0.0
    %587 = vmatprep.subr.mxu0 0.0
    %588 = vmatpush1.msra.mxu0 0.0
    %589 = vmatprep.subr.mxu0 0.0
    %590 = vmatpush1.msra.mxu0 0.0
    %591 = vmatprep.subr.mxu0 0.0
    %592 = vmatpush1.msra.mxu0 0.0
    %593 = vmatprep.subr.mxu0 0.0
    %594 = vmatpush1.msra.mxu0 0.0
    %595 = vmatprep.subr.mxu0 0.0
    %596 = vmatpush1.msra.mxu0 0.0
    %597 = vmatprep.subr.mxu0 0.0
    %598 = vmatpush1.msra.mxu0 0.0
    %599 = vmatprep.subr.mxu0 0.0
    %600 = vmatpush1.msra.mxu0 0.0
    %601 = vmatprep.subr.mxu0 0.0
    %602 = vmatpush1.msra.mxu0 0.0
    %603 = vmatprep.subr.mxu0 0.0
    %604 = vmatpush1.msra.mxu0 0.0
    %605 = vmatprep.subr.mxu0 0.0
    %606 = vmatpush1.msra.mxu0 0.0
    %607 = vmatprep.subr.mxu0 0.0
    %608 = vmatpush1.msra.mxu0 0.0
    %609 = vmatprep.subr.mxu0 0.0
    %610 = vmatpush1.msra.mxu0 0.0
    %611 = vmatprep.subr.mxu0 0.0
    %612 = vmatpush1.msra.mxu0 0.0
    %613 = vmatprep.subr.mxu0 0.0
    %614 = vmatpush1.msra.mxu0 0.0
    %615 = vmatprep.subr.mxu0 0.0
    %616 = vmatpush1.msra.mxu0 0.0
    %617 = vmatprep.mubr.f32.mxu0 0.0
    %618 = vmatmul.mubr.f32.gmra.mrb[0].mxu0 %v551
    %v619 = vpop.f32.mrb[0].mxu0
    %v620 = vadd.f32 0.0, %v619
    %v621 = vpop.f32.mrb[0].mxu0
    %622 = vdwg.mxu0
    %v624 = vrot.slane %v620, 4
    %v626 = vadd.f32 %v122, %v624
    %v627 = vmul.f32 %v626, 0.5
    %v628 = vtanh.pop %v627
    %v629 = vadd.f32 %v628, 1.0
    %v630 = vmul.f32 %v629, 0.5
    %v631 = vtanh.pop %v626
    %v632 = vsel %vm134, %v631, %v630
    %v634 = vrot.slane %v434, 6
    %v636 = vmul.f32 %v632, %v634
    %638 = vrot.lane.b32.xlu0 %v632, 64
    %v639 = vpop.permute.xlu0 %638
    %v641 = vmul.f32 %v632, %v639
    %643 = vrot.lane.b32.xlu0 %v641, 32
    %v644 = vpop.permute.xlu0 %643
    %v646 = vadd.f32 %v636, %v644
    %v647 = vtanh.pop %v646
    %649 = vrot.lane.b32.xlu0 %v647, 64
    %v650 = vpop.permute.xlu0 %649
    %v652 = vmul.f32 %v632, %v650
    %654 = vrot.lane.b32.xlu0 %v652, 32
    %v655 = vpop.permute.xlu0 %654
    %v658 = vrot.slane %v547, 4
    %659 = vrot.lane.b32.xlu0 %v658, 64
    %v660 = vpop.permute.xlu0 %659
    %v662 = vsel %vm135, %v655, %v660
    %v664 = vrot.slane %v662, 4
    %v665 = vsel %vm242, %v664, 0
    %667 = vmatprep.subr.mxu0 0.0
    %668 = vmatpush1.msra.mxu0 %v31
    %669 = vmatprep.subr.mxu0 0.0
    %670 = vmatpush1.msra.mxu0 %v32
    %671 = vmatprep.subr.mxu0 0.0
    %672 = vmatpush1.msra.mxu0 %v33
    %673 = vmatprep.subr.mxu0 0.0
    %674 = vmatpush1.msra.mxu0 %v34
    %675 = vmatprep.subr.mxu0 0.0
    %676 = vmatpush1.msra.mxu0 %v35
    %677 = vmatprep.subr.mxu0 0.0
    %678 = vmatpush1.msra.mxu0 %v36
    %679 = vmatprep.subr.mxu0 0.0
    %680 = vmatpush1.msra.mxu0 %v37
    %681 = vmatprep.subr.mxu0 0.0
    %682 = vmatpush1.msra.mxu0 %v38
    %683 = vmatprep.subr.mxu0 0.0
    %684 = vmatpush1.msra.mxu0 0.0
    %685 = vmatprep.subr.mxu0 0.0
    %686 = vmatpush1.msra.mxu0 0.0
    %687 = vmatprep.subr.mxu0 0.0
    %688 = vmatpush1.msra.mxu0 0.0
    %689 = vmatprep.subr.mxu0 0.0
    %690 = vmatpush1.msra.mxu0 0.0
    %691 = vmatprep.subr.mxu0 0.0
    %692 = vmatpush1.msra.mxu0 0.0
    %693 = vmatprep.subr.mxu0 0.0
    %694 = vmatpush1.msra.mxu0 0.0
    %695 = vmatprep.subr.mxu0 0.0
    %696 = vmatpush1.msra.mxu0 0.0
    %697 = vmatprep.subr.mxu0 0.0
    %698 = vmatpush1.msra.mxu0 0.0
    %699 = vmatprep.subr.mxu0 0.0
    %700 = vmatpush1.msra.mxu0 0.0
    %701 = vmatprep.subr.mxu0 0.0
    %702 = vmatpush1.msra.mxu0 0.0
    %703 = vmatprep.subr.mxu0 0.0
    %704 = vmatpush1.msra.mxu0 0.0
    %705 = vmatprep.subr.mxu0 0.0
    %706 = vmatpush1.msra.mxu0 0.0
    %707 = vmatprep.subr.mxu0 0.0
    %708 = vmatpush1.msra.mxu0 0.0
    %709 = vmatprep.subr.mxu0 0.0
    %710 = vmatpush1.msra.mxu0 0.0
    %711 = vmatprep.subr.mxu0 0.0
    %712 = vmatpush1.msra.mxu0 0.0
    %713 = vmatprep.subr.mxu0 0.0
    %714 = vmatpush1.msra.mxu0 0.0
    %715 = vmatprep.subr.mxu0 0.0
    %716 = vmatpush1.msra.mxu0 0.0
    %717 = vmatprep.subr.mxu0 0.0
    %718 = vmatpush1.msra.mxu0 0.0
    %719 = vmatprep.subr.mxu0 0.0
    %720 = vmatpush1.msra.mxu0 0.0
    %721 = vmatprep.subr.mxu0 0.0
    %722 = vmatpush1.msra.mxu0 0.0
    %723 = vmatprep.subr.mxu0 0.0
    %724 = vmatpush1.msra.mxu0 0.0
    %725 = vmatprep.subr.mxu0 0.0
    %726 = vmatpush1.msra.mxu0 0.0
    %727 = vmatprep.subr.mxu0 0.0
    %728 = vmatpush1.msra.mxu0 0.0
    %729 = vmatprep.subr.mxu0 0.0
    %730 = vmatpush1.msra.mxu0 0.0
    %731 = vmatprep.mubr.f32.mxu0 0.0
    %732 = vmatmul.mubr.f32.gmra.mrb[0].mxu0 %v665
    %v733 = vpop.f32.mrb[0].mxu0
    %v734 = vadd.f32 %v241, %v733
    %v735 = vpop.f32.mrb[0].mxu0
    %736 = vdwg.mxu0
    %v737 = vmul.f32 %v734, 0.5
    %v738 = vtanh.pop %v737
    %v739 = vadd.f32 %v738, 1.0
    %v740 = vmul.f32 %v739, 0.5
    %v741 = vtanh.pop %v734
    %v742 = vsel %vm134, %v741, %v740
    %v743 = vmul.f32 %v742, %v541
    %745 = vrot.lane.b32.xlu0 %v742, 64
    %v746 = vpop.permute.xlu0 %745
    %v748 = vmul.f32 %v742, %v746
    %750 = vrot.lane.b32.xlu0 %v748, 32
    %v751 = vpop.permute.xlu0 %750
    %v753 = vadd.f32 %v743, %v751
    %v754 = vtanh.pop %v753
    %756 = vrot.lane.b32.xlu0 %v754, 64
    %v757 = vpop.permute.xlu0 %756
    %v759 = vmul.f32 %v742, %v757
    %v760 = vrot.slane %v652, 4
    %761 = vrot.lane.b32.xlu0 %v760, 32
    %v762 = vpop.permute.xlu0 %761
    %v763 = vsel %vm135, %v762, 0
    %765 = vmatprep.subr.mxu0 0.0
    %766 = vmatpush1.msra.mxu0 %v26
    %767 = vmatprep.subr.mxu0 0.0
    %768 = vmatpush1.msra.mxu0 %v27
    %769 = vmatprep.subr.mxu0 0.0
    %770 = vmatpush1.msra.mxu0 %v28
    %771 = vmatprep.subr.mxu0 0.0
    %772 = vmatpush1.msra.mxu0 %v29
    %773 = vmatprep.subr.mxu0 0.0
    %774 = vmatpush1.msra.mxu0 0.0
    %775 = vmatprep.subr.mxu0 0.0
    %776 = vmatpush1.msra.mxu0 0.0
    %777 = vmatprep.subr.mxu0 0.0
    %778 = vmatpush1.msra.mxu0 0.0
    %779 = vmatprep.subr.mxu0 0.0
    %780 = vmatpush1.msra.mxu0 0.0
    %781 = vmatprep.subr.mxu0 0.0
    %782 = vmatpush1.msra.mxu0 0.0
    %783 = vmatprep.subr.mxu0 0.0
    %784 = vmatpush1.msra.mxu0 0.0
    %785 = vmatprep.subr.mxu0 0.0
    %786 = vmatpush1.msra.mxu0 0.0
    %787 = vmatprep.subr.mxu0 0.0
    %788 = vmatpush1.msra.mxu0 0.0
    %789 = vmatprep.subr.mxu0 0.0
    %790 = vmatpush1.msra.mxu0 0.0
    %791 = vmatprep.subr.mxu0 0.0
    %792 = vmatpush1.msra.mxu0 0.0
    %793 = vmatprep.subr.mxu0 0.0
    %794 = vmatpush1.msra.mxu0 0.0
    %795 = vmatprep.subr.mxu0 0.0
    %796 = vmatpush1.msra.mxu0 0.0
    %797 = vmatprep.subr.mxu0 0.0
    %798 = vmatpush1.msra.mxu0 0.0
    %799 = vmatprep.subr.mxu0 0.0
    %800 = vmatpush1.msra.mxu0 0.0
    %801 = vmatprep.subr.mxu0 0.0
    %802 = vmatpush1.msra.mxu0 0.0
    %803 = vmatprep.subr.mxu0 0.0
    %804 = vmatpush1.msra.mxu0 0.0
    %805 = vmatprep.subr.mxu0 0.0
    %806 = vmatpush1.msra.mxu0 0.0
    %807 = vmatprep.subr.mxu0 0.0
    %808 = vmatpush1.msra.mxu0 0.0
    %809 = vmatprep.subr.mxu0 0.0
    %810 = vmatpush1.msra.mxu0 0.0
    %811 = vmatprep.subr.mxu0 0.0
    %812 = vmatpush1.msra.mxu0 0.0
    %813 = vmatprep.subr.mxu0 0.0
    %814 = vmatpush1.msra.mxu0 0.0
    %815 = vmatprep.subr.mxu0 0.0
    %816 = vmatpush1.msra.mxu0 0.0
    %817 = vmatprep.subr.mxu0 0.0
    %818 = vmatpush1.msra.mxu0 0.0
    %819 = vmatprep.subr.mxu0 0.0
    %820 = vmatpush1.msra.mxu0 0.0
    %821 = vmatprep.subr.mxu0 0.0
    %822 = vmatpush1.msra.mxu0 0.0
    %823 = vmatprep.subr.mxu0 0.0
    %824 = vmatpush1.msra.mxu0 0.0
    %825 = vmatprep.subr.mxu0 0.0
    %826 = vmatpush1.msra.mxu0 0.0
    %827 = vmatprep.subr.mxu0 0.0
    %828 = vmatpush1.msra.mxu0 0.0
    %829 = vmatprep.mubr.f32.mxu0 0.0
    %830 = vmatmul.mubr.f32.gmra.mrb[0].mxu0 %v763
    %v831 = vpop.f32.mrb[0].mxu0
    %v832 = vadd.f32 0.0, %v831
    %v833 = vpop.f32.mrb[0].mxu0
    %834 = vdwg.mxu0
    %v836 = vrot.slane %v832, 2
    %v838 = vadd.f32 %v122, %v836
    %v839 = vmul.f32 %v838, 0.5
    %v840 = vtanh.pop %v839
    %v841 = vadd.f32 %v840, 1.0
    %v842 = vmul.f32 %v841, 0.5
    %v843 = vtanh.pop %v838
    %v844 = vsel %vm134, %v843, %v842
    %v846 = vrot.slane %v646, 6
    %v848 = vmul.f32 %v844, %v846
    %850 = vrot.lane.b32.xlu0 %v844, 64
    %v851 = vpop.permute.xlu0 %850
    %v853 = vmul.f32 %v844, %v851
    %855 = vrot.lane.b32.xlu0 %v853, 32
    %v856 = vpop.permute.xlu0 %855
    %v858 = vadd.f32 %v848, %v856
    %v859 = vtanh.pop %v858
    %861 = vrot.lane.b32.xlu0 %v859, 64
    %v862 = vpop.permute.xlu0 %861
    %v864 = vmul.f32 %v844, %v862
    %866 = vrot.lane.b32.xlu0 %v864, 32
    %v867 = vpop.permute.xlu0 %866
    %v870 = vrot.slane %v759, 2
    %871 = vrot.lane.b32.xlu0 %v870, 64
    %v872 = vpop.permute.xlu0 %871
    %v874 = vsel %vm135, %v867, %v872
    %v876 = vrot.slane %v874, 6
    %v877 = vsel %vm242, %v876, 0
    %879 = vmatprep.subr.mxu0 0.0
    %880 = vmatpush1.msra.mxu0 %v31
    %881 = vmatprep.subr.mxu0 0.0
    %882 = vmatpush1.msra.mxu0 %v32
    %883 = vmatprep.subr.mxu0 0.0
    %884 = vmatpush1.msra.mxu0 %v33
    %885 = vmatprep.subr.mxu0 0.0
    %886 = vmatpush1.msra.mxu0 %v34
    %887 = vmatprep.subr.mxu0 0.0
    %888 = vmatpush1.msra.mxu0 %v35
    %889 = vmatprep.subr.mxu0 0.0
    %890 = vmatpush1.msra.mxu0 %v36
    %891 = vmatprep.subr.mxu0 0.0
    %892 = vmatpush1.msra.mxu0 %v37
    %893 = vmatprep.subr.mxu0 0.0
    %894 = vmatpush1.msra.mxu0 %v38
    %895 = vmatprep.subr.mxu0 0.0
    %896 = vmatpush1.msra.mxu0 0.0
    %897 = vmatprep.subr.mxu0 0.0
    %898 = vmatpush1.msra.mxu0 0.0
    %899 = vmatprep.subr.mxu0 0.0
    %900 = vmatpush1.msra.mxu0 0.0
    %901 = vmatprep.subr.mxu0 0.0
    %902 = vmatpush1.msra.mxu0 0.0
    %903 = vmatprep.subr.mxu0 0.0
    %904 = vmatpush1.msra.mxu0 0.0
    %905 = vmatprep.subr.mxu0 0.0
    %906 = vmatpush1.msra.mxu0 0.0
    %907 = vmatprep.subr.mxu0 0.0
    %908 = vmatpush1.msra.mxu0 0.0
    %909 = vmatprep.subr.mxu0 0.0
    %910 = vmatpush1.msra.mxu0 0.0
    %911 = vmatprep.subr.mxu0 0.0
    %912 = vmatpush1.msra.mxu0 0.0
    %913 = vmatprep.subr.mxu0 0.0
    %914 = vmatpush1.msra.mxu0 0.0
    %915 = vmatprep.subr.mxu0 0.0
    %916 = vmatpush1.msra.mxu0 0.0
    %917 = vmatprep.subr.mxu0 0.0
    %918 = vmatpush1.msra.mxu0 0.0
    %919 = vmatprep.subr.mxu0 0.0
    %920 = vmatpush1.msra.mxu0 0.0
    %921 = vmatprep.subr.mxu0 0.0
    %922 = vmatpush1.msra.mxu0 0.0
    %923 = vmatprep.subr.mxu0 0.0
    %924 = vmatpush1.msra.mxu0 0.0
    %925 = vmatprep.subr.mxu0 0.0
    %926 = vmatpush1.msra.mxu0 0.0
    %927 = vmatprep.subr.mxu0 0.0
    %928 = vmatpush1.msra.mxu0 0.0
    %929 = vmatprep.subr.mxu0 0.0
    %930 = vmatpush1.msra.mxu0 0.0
    %931 = vmatprep.subr.mxu0 0.0
    %932 = vmatpush1.msra.mxu0 0.0
    %933 = vmatprep.subr.mxu0 0.0
    %934 = vmatpush1.msra.mxu0 0.0
    %935 = vmatprep.subr.mxu0 0.0
    %936 = vmatpush1.msra.mxu0 0.0
    %937 = vmatprep.subr.mxu0 0.0
    %938 = vmatpush1.msra.mxu0 0.0
    %939 = vmatprep.subr.mxu0 0.0
    %940 = vmatpush1.msra.mxu0 0.0
    %941 = vmatprep.subr.mxu0 0.0
    %942 = vmatpush1.msra.mxu0 0.0
    %943 = vmatprep.mubr.f32.mxu0 0.0
    %944 = vmatmul.mubr.f32.gmra.mrb[0].mxu0 %v877
    %v945 = vpop.f32.mrb[0].mxu0
    %v946 = vadd.f32 %v241, %v945
    %v947 = vpop.f32.mrb[0].mxu0
    %948 = vdwg.mxu0
    %v949 = vmul.f32 %v946, 0.5
    %v950 = vtanh.pop %v949
    %v951 = vadd.f32 %v950, 1.0
    %v952 = vmul.f32 %v951, 0.5
    %v953 = vtanh.pop %v946
    %v954 = vsel %vm134, %v953, %v952
    %v955 = vmul.f32 %v954, %v753
    %957 = vrot.lane.b32.xlu0 %v954, 64
    %v958 = vpop.permute.xlu0 %957
    %v960 = vmul.f32 %v954, %v958
    %962 = vrot.lane.b32.xlu0 %v960, 32
    %v963 = vpop.permute.xlu0 %962
    %v965 = vadd.f32 %v955, %v963
    %v966 = vtanh.pop %v965
    %968 = vrot.lane.b32.xlu0 %v966, 64
    %v969 = vpop.permute.xlu0 %968
    %v971 = vmul.f32 %v954, %v969
    %v972 = vrot.slane %v864, 6
    %973 = vrot.lane.b32.xlu0 %v972, 32
    %v974 = vpop.permute.xlu0 %973
    %v975 = vsel %vm135, %v974, 0
    %977 = vmatprep.subr.mxu0 0.0
    %978 = vmatpush1.msra.mxu0 %v26
    %979 = vmatprep.subr.mxu0 0.0
    %980 = vmatpush1.msra.mxu0 %v27
    %981 = vmatprep.subr.mxu0 0.0
    %982 = vmatpush1.msra.mxu0 %v28
    %983 = vmatprep.subr.mxu0 0.0
    %984 = vmatpush1.msra.mxu0 %v29
    %985 = vmatprep.subr.mxu0 0.0
    %986 = vmatpush1.msra.mxu0 0.0
    %987 = vmatprep.subr.mxu0 0.0
    %988 = vmatpush1.msra.mxu0 0.0
    %989 = vmatprep.subr.mxu0 0.0
    %990 = vmatpush1.msra.mxu0 0.0
    %991 = vmatprep.subr.mxu0 0.0
    %992 = vmatpush1.msra.mxu0 0.0
    %993 = vmatprep.subr.mxu0 0.0
    %994 = vmatpush1.msra.mxu0 0.0
    %995 = vmatprep.subr.mxu0 0.0
    %996 = vmatpush1.msra.mxu0 0.0
    %997 = vmatprep.subr.mxu0 0.0
    %998 = vmatpush1.msra.mxu0 0.0
    %999 = vmatprep.subr.mxu0 0.0
    %1000 = vmatpush1.msra.mxu0 0.0
    %1001 = vmatprep.subr.mxu0 0.0
    %1002 = vmatpush1.msra.mxu0 0.0
    %1003 = vmatprep.subr.mxu0 0.0
    %1004 = vmatpush1.msra.mxu0 0.0
    %1005 = vmatprep.subr.mxu0 0.0
    %1006 = vmatpush1.msra.mxu0 0.0
    %1007 = vmatprep.subr.mxu0 0.0
    %1008 = vmatpush1.msra.mxu0 0.0
    %1009 = vmatprep.subr.mxu0 0.0
    %1010 = vmatpush1.msra.mxu0 0.0
    %1011 = vmatprep.subr.mxu0 0.0
    %1012 = vmatpush1.msra.mxu0 0.0
    %1013 = vmatprep.subr.mxu0 0.0
    %1014 = vmatpush1.msra.mxu0 0.0
    %1015 = vmatprep.subr.mxu0 0.0
    %1016 = vmatpush1.msra.mxu0 0.0
    %1017 = vmatprep.subr.mxu0 0.0
    %1018 = vmatpush1.msra.mxu0 0.0
    %1019 = vmatprep.subr.mxu0 0.0
    %1020 = vmatpush1.msra.mxu0 0.0
    %1021 = vmatprep.subr.mxu0 0.0
    %1022 = vmatpush1.msra.mxu0 0.0
    %1023 = vmatprep.subr.mxu0 0.0
    %1024 = vmatpush1.msra.mxu0 0.0
    %1025 = vmatprep.subr.mxu0 0.0
    %1026 = vmatpush1.msra.mxu0 0.0
    %1027 = vmatprep.subr.mxu0 0.0
    %1028 = vmatpush1.msra.mxu0 0.0
    %1029 = vmatprep.subr.mxu0 0.0
    %1030 = vmatpush1.msra.mxu0 0.0
    %1031 = vmatprep.subr.mxu0 0.0
    %1032 = vmatpush1.msra.mxu0 0.0
    %1033 = vmatprep.subr.mxu0 0.0
    %1034 = vmatpush1.msra.mxu0 0.0
    %1035 = vmatprep.subr.mxu0 0.0
    %1036 = vmatpush1.msra.mxu0 0.0
    %1037 = vmatprep.subr.mxu0 0.0
    %1038 = vmatpush1.msra.mxu0 0.0
    %1039 = vmatprep.subr.mxu0 0.0
    %1040 = vmatpush1.msra.mxu0 0.0
    %1041 = vmatprep.mubr.f32.mxu0 0.0
    %1042 = vmatmul.mubr.f32.gmra.mrb[0].mxu0 %v975
    %v1043 = vpop.f32.mrb[0].mxu0
    %v1044 = vadd.f32 0.0, %v1043
    %v1045 = vpop.f32.mrb[0].mxu0
    %1046 = vdwg.mxu0
    %v1047 = vadd.f32 %v127, %v1044
    %v1048 = vmul.f32 %v1047, 0.5
    %v1049 = vtanh.pop %v1048
    %v1050 = vadd.f32 %v1049, 1.0
    %v1051 = vmul.f32 %v1050, 0.5
    %v1052 = vtanh.pop %v1047
    %v1053 = vsel %vm134, %v1052, %v1051
    %v1055 = vrot.slane %v858, 6
    %v1057 = vmul.f32 %v1053, %v1055
    %1059 = vrot.lane.b32.xlu0 %v1053, 64
    %v1060 = vpop.permute.xlu0 %1059
    %v1062 = vmul.f32 %v1053, %v1060
    %1064 = vrot.lane.b32.xlu0 %v1062, 32
    %v1065 = vpop.permute.xlu0 %1064
    %v1067 = vadd.f32 %v1057, %v1065
    %v1068 = vtanh.pop %v1067
    %1070 = vrot.lane.b32.xlu0 %v1068, 64
    %v1071 = vpop.permute.xlu0 %1070
    %v1073 = vmul.f32 %v1053, %v1071
    %1075 = vrot.lane.b32.xlu0 %v1073, 32
    %v1076 = vpop.permute.xlu0 %1075
    %1079 = vrot.lane.b32.xlu0 %v971, 64
    %v1080 = vpop.permute.xlu0 %1079
    %v1082 = vsel %vm135, %v1076, %v1080
    %v1084 = vsel %vm242, %v1082, 0
    %1086 = vmatprep.subr.mxu0 0.0
    %1087 = vmatpush1.msra.mxu0 %v31
    %1088 = vmatprep.subr.mxu0 0.0
    %1089 = vmatpush1.msra.mxu0 %v32
    %1090 = vmatprep.subr.mxu0 0.0
    %1091 = vmatpush1.msra.mxu0 %v33
    %1092 = vmatprep.subr.mxu0 0.0
    %1093 = vmatpush1.msra.mxu0 %v34
    %1094 = vmatprep.subr.mxu0 0.0
    %1095 = vmatpush1.msra.mxu0 %v35
    %1096 = vmatprep.subr.mxu0 0.0
    %1097 = vmatpush1.msra.mxu0 %v36
    %1098 = vmatprep.subr.mxu0 0.0
    %1099 = vmatpush1.msra.mxu0 %v37
    %1100 = vmatprep.subr.mxu0 0.0
    %1101 = vmatpush1.msra.mxu0 %v38
    %1102 = vmatprep.subr.mxu0 0.0
    %1103 = vmatpush1.msra.mxu0 0.0
    %1104 = vmatprep.subr.mxu0 0.0
    %1105 = vmatpush1.msra.mxu0 0.0
    %1106 = vmatprep.subr.mxu0 0.0
    %1107 = vmatpush1.msra.mxu0 0.0
    %1108 = vmatprep.subr.mxu0 0.0
    %1109 = vmatpush1.msra.mxu0 0.0
    %1110 = vmatprep.subr.mxu0 0.0
    %1111 = vmatpush1.msra.mxu0 0.0
    %1112 = vmatprep.subr.mxu0 0.0
    %1113 = vmatpush1.msra.mxu0 0.0
    %1114 = vmatprep.subr.mxu0 0.0
    %1115 = vmatpush1.msra.mxu0 0.0
    %1116 = vmatprep.subr.mxu0 0.0
    %1117 = vmatpush1.msra.mxu0 0.0
    %1118 = vmatprep.subr.mxu0 0.0
    %1119 = vmatpush1.msra.mxu0 0.0
    %1120 = vmatprep.subr.mxu0 0.0
    %1121 = vmatpush1.msra.mxu0 0.0
    %1122 = vmatprep.subr.mxu0 0.0
    %1123 = vmatpush1.msra.mxu0 0.0
    %1124 = vmatprep.subr.mxu0 0.0
    %1125 = vmatpush1.msra.mxu0 0.0
    %1126 = vmatprep.subr.mxu0 0.0
    %1127 = vmatpush1.msra.mxu0 0.0
    %1128 = vmatprep.subr.mxu0 0.0
    %1129 = vmatpush1.msra.mxu0 0.0
    %1130 = vmatprep.subr.mxu0 0.0
    %1131 = vmatpush1.msra.mxu0 0.0
    %1132 = vmatprep.subr.mxu0 0.0
    %1133 = vmatpush1.msra.mxu0 0.0
    %1134 = vmatprep.subr.mxu0 0.0
    %1135 = vmatpush1.msra.mxu0 0.0
    %1136 = vmatprep.subr.mxu0 0.0
    %1137 = vmatpush1.msra.mxu0 0.0
    %1138 = vmatprep.subr.mxu0 0.0
    %1139 = vmatpush1.msra.mxu0 0.0
    %1140 = vmatprep.subr.mxu0 0.0
    %1141 = vmatpush1.msra.mxu0 0.0
    %1142 = vmatprep.subr.mxu0 0.0
    %1143 = vmatpush1.msra.mxu0 0.0
    %1144 = vmatprep.subr.mxu0 0.0
    %1145 = vmatpush1.msra.mxu0 0.0
    %1146 = vmatprep.subr.mxu0 0.0
    %1147 = vmatpush1.msra.mxu0 0.0
    %1148 = vmatprep.subr.mxu0 0.0
    %1149 = vmatpush1.msra.mxu0 0.0
    %1150 = vmatprep.mubr.f32.mxu0 0.0
    %1151 = vmatmul.mubr.f32.gmra.mrb[0].mxu0 %v1084
    %v1152 = vpop.f32.mrb[0].mxu0
    %v1153 = vadd.f32 %v241, %v1152
    %v1154 = vpop.f32.mrb[0].mxu0
    %1155 = vdwg.mxu0
    %v1156 = vmul.f32 %v1153, 0.5
    %v1157 = vtanh.pop %v1156
    %v1158 = vadd.f32 %v1157, 1.0
    %v1159 = vmul.f32 %v1158, 0.5
    %v1160 = vtanh.pop %v1153
    %v1161 = vsel %vm134, %v1160, %v1159
    %v1162 = vmul.f32 %v1161, %v965
    %1164 = vrot.lane.b32.xlu0 %v1161, 64
    %v1165 = vpop.permute.xlu0 %1164
    %v1167 = vmul.f32 %v1161, %v1165
    %1169 = vrot.lane.b32.xlu0 %v1167, 32
    %v1170 = vpop.permute.xlu0 %1169
    %v1172 = vadd.f32 %v1162, %v1170
    %v1173 = vtanh.pop %v1172
    %1175 = vrot.lane.b32.xlu0 %v1173, 64
    %v1176 = vpop.permute.xlu0 %1175
    %v1178 = vmul.f32 %v1161, %v1176
    %v1179 = vsel %vm135, %v1076, 0
    %1181 = vmatprep.subr.mxu0 0.0
    %1182 = vmatpush1.msra.mxu0 %v26
    %1183 = vmatprep.subr.mxu0 0.0
    %1184 = vmatpush1.msra.mxu0 %v27
    %1185 = vmatprep.subr.mxu0 0.0
    %1186 = vmatpush1.msra.mxu0 %v28
    %1187 = vmatprep.subr.mxu0 0.0
    %1188 = vmatpush1.msra.mxu0 %v29
    %1189 = vmatprep.subr.mxu0 0.0
    %1190 = vmatpush1.msra.mxu0 0.0
    %1191 = vmatprep.subr.mxu0 0.0
    %1192 = vmatpush1.msra.mxu0 0.0
    %1193 = vmatprep.subr.mxu0 0.0
    %1194 = vmatpush1.msra.mxu0 0.0
    %1195 = vmatprep.subr.mxu0 0.0
    %1196 = vmatpush1.msra.mxu0 0.0
    %1197 = vmatprep.subr.mxu0 0.0
    %1198 = vmatpush1.msra.mxu0 0.0
    %1199 = vmatprep.subr.mxu0 0.0
    %1200 = vmatpush1.msra.mxu0 0.0
    %1201 = vmatprep.subr.mxu0 0.0
    %1202 = vmatpush1.msra.mxu0 0.0
    %1203 = vmatprep.subr.mxu0 0.0
    %1204 = vmatpush1.msra.mxu0 0.0
    %1205 = vmatprep.subr.mxu0 0.0
    %1206 = vmatpush1.msra.mxu0 0.0
    %1207 = vmatprep.subr.mxu0 0.0
    %1208 = vmatpush1.msra.mxu0 0.0
    %1209 = vmatprep.subr.mxu0 0.0
    %1210 = vmatpush1.msra.mxu0 0.0
    %1211 = vmatprep.subr.mxu0 0.0
    %1212 = vmatpush1.msra.mxu0 0.0
    %1213 = vmatprep.subr.mxu0 0.0
    %1214 = vmatpush1.msra.mxu0 0.0
    %1215 = vmatprep.subr.mxu0 0.0
    %1216 = vmatpush1.msra.mxu0 0.0
    %1217 = vmatprep.subr.mxu0 0.0
    %1218 = vmatpush1.msra.mxu0 0.0
    %1219 = vmatprep.subr.mxu0 0.0
    %1220 = vmatpush1.msra.mxu0 0.0
    %1221 = vmatprep.subr.mxu0 0.0
    %1222 = vmatpush1.msra.mxu0 0.0
    %1223 = vmatprep.subr.mxu0 0.0
    %1224 = vmatpush1.msra.mxu0 0.0
    %1225 = vmatprep.subr.mxu0 0.0
    %1226 = vmatpush1.msra.mxu0 0.0
    %1227 = vmatprep.subr.mxu0 0.0
    %1228 = vmatpush1.msra.mxu0 0.0
    %1229 = vmatprep.subr.mxu0 0.0
    %1230 = vmatpush1.msra.mxu0 0.0
    %1231 = vmatprep.subr.mxu0 0.0
    %1232 = vmatpush1.msra.mxu0 0.0
    %1233 = vmatprep.subr.mxu0 0.0
    %1234 = vmatpush1.msra.mxu0 0.0
    %1235 = vmatprep.subr.mxu0 0.0
    %1236 = vmatpush1.msra.mxu0 0.0
    %1237 = vmatprep.subr.mxu0 0.0
    %1238 = vmatpush1.msra.mxu0 0.0
    %1239 = vmatprep.subr.mxu0 0.0
    %1240 = vmatpush1.msra.mxu0 0.0
    %1241 = vmatprep.subr.mxu0 0.0
    %1242 = vmatpush1.msra.mxu0 0.0
    %1243 = vmatprep.subr.mxu0 0.0
    %1244 = vmatpush1.msra.mxu0 0.0
    %1245 = vmatprep.mubr.f32.mxu0 0.0
    %1246 = vmatmul.mubr.f32.gmra.mrb[0].mxu0 %v1179
    %v1247 = vpop.f32.mrb[0].mxu0
    %v1248 = vadd.f32 0.0, %v1247
    %v1249 = vpop.f32.mrb[0].mxu0
    %1250 = vdwg.mxu0
    %v1252 = vrot.slane %v1248, 6
    %v1254 = vadd.f32 %v127, %v1252
    %v1255 = vmul.f32 %v1254, 0.5
    %v1256 = vtanh.pop %v1255
    %v1257 = vadd.f32 %v1256, 1.0
    %v1258 = vmul.f32 %v1257, 0.5
    %v1259 = vtanh.pop %v1254
    %v1260 = vsel %vm134, %v1259, %v1258
    %v1262 = vrot.slane %v1067, 6
    %v1264 = vmul.f32 %v1260, %v1262
    %1266 = vrot.lane.b32.xlu0 %v1260, 64
    %v1267 = vpop.permute.xlu0 %1266
    %v1269 = vmul.f32 %v1260, %v1267
    %1271 = vrot.lane.b32.xlu0 %v1269, 32
    %v1272 = vpop.permute.xlu0 %1271
    %v1274 = vadd.f32 %v1264, %v1272
    %v1275 = vtanh.pop %v1274
    %1277 = vrot.lane.b32.xlu0 %v1275, 64
    %v1278 = vpop.permute.xlu0 %1277
    %v1280 = vmul.f32 %v1260, %v1278
    %1282 = vrot.lane.b32.xlu0 %v1280, 32
    %v1283 = vpop.permute.xlu0 %1282
    %v1286 = vrot.slane %v1178, 6
    %1287 = vrot.lane.b32.xlu0 %v1286, 64
    %v1288 = vpop.permute.xlu0 %1287
    %v1290 = vsel %vm135, %v1283, %v1288
    %v1292 = vrot.slane %v1290, 2
    %v1293 = vsel %vm242, %v1292, 0
    %1295 = vmatprep.subr.mxu0 0.0
    %1296 = vmatpush1.msra.mxu0 %v31
    %1297 = vmatprep.subr.mxu0 0.0
    %1298 = vmatpush1.msra.mxu0 %v32
    %1299 = vmatprep.subr.mxu0 0.0
    %1300 = vmatpush1.msra.mxu0 %v33
    %1301 = vmatprep.subr.mxu0 0.0
    %1302 = vmatpush1.msra.mxu0 %v34
    %1303 = vmatprep.subr.mxu0 0.0
    %1304 = vmatpush1.msra.mxu0 %v35
    %1305 = vmatprep.subr.mxu0 0.0
    %1306 = vmatpush1.msra.mxu0 %v36
    %1307 = vmatprep.subr.mxu0 0.0
    %1308 = vmatpush1.msra.mxu0 %v37
    %1309 = vmatprep.subr.mxu0 0.0
    %1310 = vmatpush1.msra.mxu0 %v38
    %1311 = vmatprep.subr.mxu0 0.0
    %1312 = vmatpush1.msra.mxu0 0.0
    %1313 = vmatprep.subr.mxu0 0.0
    %1314 = vmatpush1.msra.mxu0 0.0
    %1315 = vmatprep.subr.mxu0 0.0
    %1316 = vmatpush1.msra.mxu0 0.0
    %1317 = vmatprep.subr.mxu0 0.0
    %1318 = vmatpush1.msra.mxu0 0.0
    %1319 = vmatprep.subr.mxu0 0.0
    %1320 = vmatpush1.msra.mxu0 0.0
    %1321 = vmatprep.subr.mxu0 0.0
    %1322 = vmatpush1.msra.mxu0 0.0
    %1323 = vmatprep.subr.mxu0 0.0
    %1324 = vmatpush1.msra.mxu0 0.0
    %1325 = vmatprep.subr.mxu0 0.0
    %1326 = vmatpush1.msra.mxu0 0.0
    %1327 = vmatprep.subr.mxu0 0.0
    %1328 = vmatpush1.msra.mxu0 0.0
    %1329 = vmatprep.subr.mxu0 0.0
    %1330 = vmatpush1.msra.mxu0 0.0
    %1331 = vmatprep.subr.mxu0 0.0
    %1332 = vmatpush1.msra.mxu0 0.0
    %1333 = vmatprep.subr.mxu0 0.0
    %1334 = vmatpush1.msra.mxu0 0.0
    %1335 = vmatprep.subr.mxu0 0.0
    %1336 = vmatpush1.msra.mxu0 0.0
    %1337 = vmatprep.subr.mxu0 0.0
    %1338 = vmatpush1.msra.mxu0 0.0
    %1339 = vmatprep.subr.mxu0 0.0
    %1340 = vmatpush1.msra.mxu0 0.0
    %1341 = vmatprep.subr.mxu0 0.0
    %1342 = vmatpush1.msra.mxu0 0.0
    %1343 = vmatprep.subr.mxu0 0.0
    %1344 = vmatpush1.msra.mxu0 0.0
    %1345 = vmatprep.subr.mxu0 0.0
    %1346 = vmatpush1.msra.mxu0 0.0
    %1347 = vmatprep.subr.mxu0 0.0
    %1348 = vmatpush1.msra.mxu0 0.0
    %1349 = vmatprep.subr.mxu0 0.0
    %1350 = vmatpush1.msra.mxu0 0.0
    %1351 = vmatprep.subr.mxu0 0.0
    %1352 = vmatpush1.msra.mxu0 0.0
    %1353 = vmatprep.subr.mxu0 0.0
    %1354 = vmatpush1.msra.mxu0 0.0
    %1355 = vmatprep.subr.mxu0 0.0
    %1356 = vmatpush1.msra.mxu0 0.0
    %1357 = vmatprep.subr.mxu0 0.0
    %1358 = vmatpush1.msra.mxu0 0.0
    %1359 = vmatprep.mubr.f32.mxu0 0.0
    %1360 = vmatmul.mubr.f32.gmra.mrb[0].mxu0 %v1293
    %v1361 = vpop.f32.mrb[0].mxu0
    %v1362 = vadd.f32 %v241, %v1361
    %v1363 = vpop.f32.mrb[0].mxu0
    %1364 = vdwg.mxu0
    %v1365 = vmul.f32 %v1362, 0.5
    %v1366 = vtanh.pop %v1365
    %v1367 = vadd.f32 %v1366, 1.0
    %v1368 = vmul.f32 %v1367, 0.5
    %v1369 = vtanh.pop %v1362
    %v1370 = vsel %vm134, %v1369, %v1368
    %v1371 = vmul.f32 %v1370, %v1172
    %1373 = vrot.lane.b32.xlu0 %v1370, 64
    %v1374 = vpop.permute.xlu0 %1373
    %v1376 = vmul.f32 %v1370, %v1374
    %1378 = vrot.lane.b32.xlu0 %v1376, 32
    %v1379 = vpop.permute.xlu0 %1378
    %v1381 = vadd.f32 %v1371, %v1379
    %v1382 = vtanh.pop %v1381
    %1384 = vrot.lane.b32.xlu0 %v1382, 64
    %v1385 = vpop.permute.xlu0 %1384
    %v1387 = vmul.f32 %v1370, %v1385
    %v1388 = vrot.slane %v1280, 2
    %1389 = vrot.lane.b32.xlu0 %v1388, 32
    %v1390 = vpop.permute.xlu0 %1389
    %v1391 = vsel %vm135, %v1390, 0
    %1393 = vmatprep.subr.mxu0 0.0
    %1394 = vmatpush1.msra.mxu0 %v26
    %1395 = vmatprep.subr.mxu0 0.0
    %1396 = vmatpush1.msra.mxu0 %v27
    %1397 = vmatprep.subr.mxu0 0.0
    %1398 = vmatpush1.msra.mxu0 %v28
    %1399 = vmatprep.subr.mxu0 0.0
    %1400 = vmatpush1.msra.mxu0 %v29
    %1401 = vmatprep.subr.mxu0 0.0
    %1402 = vmatpush1.msra.mxu0 0.0
    %1403 = vmatprep.subr.mxu0 0.0
    %1404 = vmatpush1.msra.mxu0 0.0
    %1405 = vmatprep.subr.mxu0 0.0
    %1406 = vmatpush1.msra.mxu0 0.0
    %1407 = vmatprep.subr.mxu0 0.0
    %1408 = vmatpush1.msra.mxu0 0.0
    %1409 = vmatprep.subr.mxu0 0.0
    %1410 = vmatpush1.msra.mxu0 0.0
    %1411 = vmatprep.subr.mxu0 0.0
    %1412 = vmatpush1.msra.mxu0 0.0
    %1413 = vmatprep.subr.mxu0 0.0
    %1414 = vmatpush1.msra.mxu0 0.0
    %1415 = vmatprep.subr.mxu0 0.0
    %1416 = vmatpush1.msra.mxu0 0.0
    %1417 = vmatprep.subr.mxu0 0.0
    %1418 = vmatpush1.msra.mxu0 0.0
    %1419 = vmatprep.subr.mxu0 0.0
    %1420 = vmatpush1.msra.mxu0 0.0
    %1421 = vmatprep.subr.mxu0 0.0
    %1422 = vmatpush1.msra.mxu0 0.0
    %1423 = vmatprep.subr.mxu0 0.0
    %1424 = vmatpush1.msra.mxu0 0.0
    %1425 = vmatprep.subr.mxu0 0.0
    %1426 = vmatpush1.msra.mxu0 0.0
    %1427 = vmatprep.subr.mxu0 0.0
    %1428 = vmatpush1.msra.mxu0 0.0
    %1429 = vmatprep.subr.mxu0 0.0
    %1430 = vmatpush1.msra.mxu0 0.0
    %1431 = vmatprep.subr.mxu0 0.0
    %1432 = vmatpush1.msra.mxu0 0.0
    %1433 = vmatprep.subr.mxu0 0.0
    %1434 = vmatpush1.msra.mxu0 0.0
    %1435 = vmatprep.subr.mxu0 0.0
    %1436 = vmatpush1.msra.mxu0 0.0
    %1437 = vmatprep.subr.mxu0 0.0
    %1438 = vmatpush1.msra.mxu0 0.0
    %1439 = vmatprep.subr.mxu0 0.0
    %1440 = vmatpush1.msra.mxu0 0.0
    %1441 = vmatprep.subr.mxu0 0.0
    %1442 = vmatpush1.msra.mxu0 0.0
    %1443 = vmatprep.subr.mxu0 0.0
    %1444 = vmatpush1.msra.mxu0 0.0
    %1445 = vmatprep.subr.mxu0 0.0
    %1446 = vmatpush1.msra.mxu0 0.0
    %1447 = vmatprep.subr.mxu0 0.0
    %1448 = vmatpush1.msra.mxu0 0.0
    %1449 = vmatprep.subr.mxu0 0.0
    %1450 = vmatpush1.msra.mxu0 0.0
    %1451 = vmatprep.subr.mxu0 0.0
    %1452 = vmatpush1.msra.mxu0 0.0
    %1453 = vmatprep.subr.mxu0 0.0
    %1454 = vmatpush1.msra.mxu0 0.0
    %1455 = vmatprep.subr.mxu0 0.0
    %1456 = vmatpush1.msra.mxu0 0.0
    %1457 = vmatprep.mubr.f32.mxu0 0.0
    %1458 = vmatmul.mubr.f32.gmra.mrb[0].mxu0 %v1391
    %v1459 = vpop.f32.mrb[0].mxu0
    %v1460 = vadd.f32 0.0, %v1459
    %v1461 = vpop.f32.mrb[0].mxu0
    %1462 = vdwg.mxu0
    %v1464 = vrot.slane %v1460, 4
    %v1466 = vadd.f32 %v127, %v1464
    %v1467 = vmul.f32 %v1466, 0.5
    %v1468 = vtanh.pop %v1467
    %v1469 = vadd.f32 %v1468, 1.0
    %v1470 = vmul.f32 %v1469, 0.5
    %v1471 = vtanh.pop %v1466
    %v1472 = vsel %vm134, %v1471, %v1470
    %v1474 = vrot.slane %v1274, 6
    %v1476 = vmul.f32 %v1472, %v1474
    %1478 = vrot.lane.b32.xlu0 %v1472, 64
    %v1479 = vpop.permute.xlu0 %1478
    %v1481 = vmul.f32 %v1472, %v1479
    %1483 = vrot.lane.b32.xlu0 %v1481, 32
    %v1484 = vpop.permute.xlu0 %1483
    %v1486 = vadd.f32 %v1476, %v1484
    %v1487 = vtanh.pop %v1486
    %1489 = vrot.lane.b32.xlu0 %v1487, 64
    %v1490 = vpop.permute.xlu0 %1489
    %v1492 = vmul.f32 %v1472, %v1490
    %1494 = vrot.lane.b32.xlu0 %v1492, 32
    %v1495 = vpop.permute.xlu0 %1494
    %v1498 = vrot.slane %v1387, 4
    %1499 = vrot.lane.b32.xlu0 %v1498, 64
    %v1500 = vpop.permute.xlu0 %1499
    %v1502 = vsel %vm135, %v1495, %v1500
    %v1504 = vrot.slane %v1502, 4
    %v1505 = vsel %vm242, %v1504, 0
    %1507 = vmatprep.subr.mxu0 0.0
    %1508 = vmatpush1.msra.mxu0 %v31
    %1509 = vmatprep.subr.mxu0 0.0
    %1510 = vmatpush1.msra.mxu0 %v32
    %1511 = vmatprep.subr.mxu0 0.0
    %1512 = vmatpush1.msra.mxu0 %v33
    %1513 = vmatprep.subr.mxu0 0.0
    %1514 = vmatpush1.msra.mxu0 %v34
    %1515 = vmatprep.subr.mxu0 0.0
    %1516 = vmatpush1.msra.mxu0 %v35
    %1517 = vmatprep.subr.mxu0 0.0
    %1518 = vmatpush1.msra.mxu0 %v36
    %1519 = vmatprep.subr.mxu0 0.0
    %1520 = vmatpush1.msra.mxu0 %v37
    %1521 = vmatprep.subr.mxu0 0.0
    %1522 = vmatpush1.msra.mxu0 %v38
    %1523 = vmatprep.subr.mxu0 0.0
    %1524 = vmatpush1.msra.mxu0 0.0
    %1525 = vmatprep.subr.mxu0 0.0
    %1526 = vmatpush1.msra.mxu0 0.0
    %1527 = vmatprep.subr.mxu0 0.0
    %1528 = vmatpush1.msra.mxu0 0.0
    %1529 = vmatprep.subr.mxu0 0.0
    %1530 = vmatpush1.msra.mxu0 0.0
    %1531 = vmatprep.subr.mxu0 0.0
    %1532 = vmatpush1.msra.mxu0 0.0
    %1533 = vmatprep.subr.mxu0 0.0
    %1534 = vmatpush1.msra.mxu0 0.0
    %1535 = vmatprep.subr.mxu0 0.0
    %1536 = vmatpush1.msra.mxu0 0.0
    %1537 = vmatprep.subr.mxu0 0.0
    %1538 = vmatpush1.msra.mxu0 0.0
    %1539 = vmatprep.subr.mxu0 0.0
    %1540 = vmatpush1.msra.mxu0 0.0
    %1541 = vmatprep.subr.mxu0 0.0
    %1542 = vmatpush1.msra.mxu0 0.0
    %1543 = vmatprep.subr.mxu0 0.0
    %1544 = vmatpush1.msra.mxu0 0.0
    %1545 = vmatprep.subr.mxu0 0.0
    %1546 = vmatpush1.msra.mxu0 0.0
    %1547 = vmatprep.subr.mxu0 0.0
    %1548 = vmatpush1.msra.mxu0 0.0
    %1549 = vmatprep.subr.mxu0 0.0
    %1550 = vmatpush1.msra.mxu0 0.0
    %1551 = vmatprep.subr.mxu0 0.0
    %1552 = vmatpush1.msra.mxu0 0.0
    %1553 = vmatprep.subr.mxu0 0.0
    %1554 = vmatpush1.msra.mxu0 0.0
    %1555 = vmatprep.subr.mxu0 0.0
    %1556 = vmatpush1.msra.mxu0 0.0
    %1557 = vmatprep.subr.mxu0 0.0
    %1558 = vmatpush1.msra.mxu0 0.0
    %1559 = vmatprep.subr.mxu0 0.0
    %1560 = vmatpush1.msra.mxu0 0.0
    %1561 = vmatprep.subr.mxu0 0.0
    %1562 = vmatpush1.msra.mxu0 0.0
    %1563 = vmatprep.subr.mxu0 0.0
    %1564 = vmatpush1.msra.mxu0 0.0
    %1565 = vmatprep.subr.mxu0 0.0
    %1566 = vmatpush1.msra.mxu0 0.0
    %1567 = vmatprep.subr.mxu0 0.0
    %1568 = vmatpush1.msra.mxu0 0.0
    %1569 = vmatprep.subr.mxu0 0.0
    %1570 = vmatpush1.msra.mxu0 0.0
    %1571 = vmatprep.mubr.f32.mxu0 0.0
    %1572 = vmatmul.mubr.f32.gmra.mrb[0].mxu0 %v1505
    %v1573 = vpop.f32.mrb[0].mxu0
    %v1574 = vadd.f32 %v241, %v1573
    %v1575 = vpop.f32.mrb[0].mxu0
    %1576 = vdwg.mxu0
    %v1577 = vmul.f32 %v1574, 0.5
    %v1578 = vtanh.pop %v1577
    %v1579 = vadd.f32 %v1578, 1.0
    %v1580 = vmul.f32 %v1579, 0.5
    %v1581 = vtanh.pop %v1574
    %v1582 = vsel %vm134, %v1581, %v1580
    %v1583 = vmul.f32 %v1582, %v1381
    %1585 = vrot.lane.b32.xlu0 %v1582, 64
    %v1586 = vpop.permute.xlu0 %1585
    %v1588 = vmul.f32 %v1582, %v1586
    %1590 = vrot.lane.b32.xlu0 %v1588, 32
    %v1591 = vpop.permute.xlu0 %1590
    %v1593 = vadd.f32 %v1583, %v1591
    %v1594 = vtanh.pop %v1593
    %1596 = vrot.lane.b32.xlu0 %v1594, 64
    %v1597 = vpop.permute.xlu0 %1596
    %v1599 = vmul.f32 %v1582, %v1597
    %v1600 = vrot.slane %v1492, 4
    %1601 = vrot.lane.b32.xlu0 %v1600, 32
    %v1602 = vpop.permute.xlu0 %1601
    %v1603 = vsel %vm135, %v1602, 0
    %1605 = vmatprep.subr.mxu0 0.0
    %1606 = vmatpush1.msra.mxu0 %v26
    %1607 = vmatprep.subr.mxu0 0.0
    %1608 = vmatpush1.msra.mxu0 %v27
    %1609 = vmatprep.subr.mxu0 0.0
    %1610 = vmatpush1.msra.mxu0 %v28
    %1611 = vmatprep.subr.mxu0 0.0
    %1612 = vmatpush1.msra.mxu0 %v29
    %1613 = vmatprep.subr.mxu0 0.0
    %1614 = vmatpush1.msra.mxu0 0.0
    %1615 = vmatprep.subr.mxu0 0.0
    %1616 = vmatpush1.msra.mxu0 0.0
    %1617 = vmatprep.subr.mxu0 0.0
    %1618 = vmatpush1.msra.mxu0 0.0
    %1619 = vmatprep.subr.mxu0 0.0
    %1620 = vmatpush1.msra.mxu0 0.0
    %1621 = vmatprep.subr.mxu0 0.0
    %1622 = vmatpush1.msra.mxu0 0.0
    %1623 = vmatprep.subr.mxu0 0.0
    %1624 = vmatpush1.msra.mxu0 0.0
    %1625 = vmatprep.subr.mxu0 0.0
    %1626 = vmatpush1.msra.mxu0 0.0
    %1627 = vmatprep.subr.mxu0 0.0
    %1628 = vmatpush1.msra.mxu0 0.0
    %1629 = vmatprep.subr.mxu0 0.0
    %1630 = vmatpush1.msra.mxu0 0.0
    %1631 = vmatprep.subr.mxu0 0.0
    %1632 = vmatpush1.msra.mxu0 0.0
    %1633 = vmatprep.subr.mxu0 0.0
    %1634 = vmatpush1.msra.mxu0 0.0
    %1635 = vmatprep.subr.mxu0 0.0
    %1636 = vmatpush1.msra.mxu0 0.0
    %1637 = vmatprep.subr.mxu0 0.0
    %1638 = vmatpush1.msra.mxu0 0.0
    %1639 = vmatprep.subr.mxu0 0.0
    %1640 = vmatpush1.msra.mxu0 0.0
    %1641 = vmatprep.subr.mxu0 0.0
    %1642 = vmatpush1.msra.mxu0 0.0
    %1643 = vmatprep.subr.mxu0 0.0
    %1644 = vmatpush1.msra.mxu0 0.0
    %1645 = vmatprep.subr.mxu0 0.0
    %1646 = vmatpush1.msra.mxu0 0.0
    %1647 = vmatprep.subr.mxu0 0.0
    %1648 = vmatpush1.msra.mxu0 0.0
    %1649 = vmatprep.subr.mxu0 0.0
    %1650 = vmatpush1.msra.mxu0 0.0
    %1651 = vmatprep.subr.mxu0 0.0
    %1652 = vmatpush1.msra.mxu0 0.0
    %1653 = vmatprep.subr.mxu0 0.0
    %1654 = vmatpush1.msra.mxu0 0.0
    %1655 = vmatprep.subr.mxu0 0.0
    %1656 = vmatpush1.msra.mxu0 0.0
    %1657 = vmatprep.subr.mxu0 0.0
    %1658 = vmatpush1.msra.mxu0 0.0
    %1659 = vmatprep.subr.mxu0 0.0
    %1660 = vmatpush1.msra.mxu0 0.0
    %1661 = vmatprep.subr.mxu0 0.0
    %1662 = vmatpush1.msra.mxu0 0.0
    %1663 = vmatprep.subr.mxu0 0.0
    %1664 = vmatpush1.msra.mxu0 0.0
    %1665 = vmatprep.subr.mxu0 0.0
    %1666 = vmatpush1.msra.mxu0 0.0
    %1667 = vmatprep.subr.mxu0 0.0
    %1668 = vmatpush1.msra.mxu0 0.0
    %1669 = vmatprep.mubr.f32.mxu0 0.0
    %1670 = vmatmul.mubr.f32.gmra.mrb[0].mxu0 %v1603
    %v1671 = vpop.f32.mrb[0].mxu0
    %v1672 = vadd.f32 0.0, %v1671
    %v1673 = vpop.f32.mrb[0].mxu0
    %1674 = vdwg.mxu0
    %v1676 = vrot.slane %v1672, 2
    %v1678 = vadd.f32 %v127, %v1676
    %v1679 = vmul.f32 %v1678, 0.5
    %v1680 = vtanh.pop %v1679
    %v1681 = vadd.f32 %v1680, 1.0
    %v1682 = vmul.f32 %v1681, 0.5
    %v1683 = vtanh.pop %v1678
    %v1684 = vsel %vm134, %v1683, %v1682
    %v1686 = vrot.slane %v1486, 6
    %v1688 = vmul.f32 %v1684, %v1686
    %1690 = vrot.lane.b32.xlu0 %v1684, 64
    %v1691 = vpop.permute.xlu0 %1690
    %v1693 = vmul.f32 %v1684, %v1691
    %1695 = vrot.lane.b32.xlu0 %v1693, 32
    %v1696 = vpop.permute.xlu0 %1695
    %v1698 = vadd.f32 %v1688, %v1696
    %v1699 = vtanh.pop %v1698
    %1701 = vrot.lane.b32.xlu0 %v1699, 64
    %v1702 = vpop.permute.xlu0 %1701
    %v1704 = vmul.f32 %v1684, %v1702
    %1706 = vrot.lane.b32.xlu0 %v1704, 32
    %v1707 = vpop.permute.xlu0 %1706
    %v1710 = vrot.slane %v1599, 2
    %1711 = vrot.lane.b32.xlu0 %v1710, 64
    %v1712 = vpop.permute.xlu0 %1711
    %v1714 = vsel %vm135, %v1707, %v1712
    %v1716 = vrot.slane %v1714, 6
    %v1717 = vsel %vm242, %v1716, 0
    %1719 = vmatprep.subr.mxu0 0.0
    %1720 = vmatpush1.msra.mxu0 %v31
    %1721 = vmatprep.subr.mxu0 0.0
    %1722 = vmatpush1.msra.mxu0 %v32
    %1723 = vmatprep.subr.mxu0 0.0
    %1724 = vmatpush1.msra.mxu0 %v33
    %1725 = vmatprep.subr.mxu0 0.0
    %1726 = vmatpush1.msra.mxu0 %v34
    %1727 = vmatprep.subr.mxu0 0.0
    %1728 = vmatpush1.msra.mxu0 %v35
    %1729 = vmatprep.subr.mxu0 0.0
    %1730 = vmatpush1.msra.mxu0 %v36
    %1731 = vmatprep.subr.mxu0 0.0
    %1732 = vmatpush1.msra.mxu0 %v37
    %1733 = vmatprep.subr.mxu0 0.0
    %1734 = vmatpush1.msra.mxu0 %v38
    %1735 = vmatprep.subr.mxu0 0.0
    %1736 = vmatpush1.msra.mxu0 0.0
    %1737 = vmatprep.subr.mxu0 0.0
    %1738 = vmatpush1.msra.mxu0 0.0
    %1739 = vmatprep.subr.mxu0 0.0
    %1740 = vmatpush1.msra.mxu0 0.0
    %1741 = vmatprep.subr.mxu0 0.0
    %1742 = vmatpush1.msra.mxu0 0.0
    %1743 = vmatprep.subr.mxu0 0.0
    %1744 = vmatpush1.msra.mxu0 0.0
    %1745 = vmatprep.subr.mxu0 0.0
    %1746 = vmatpush1.msra.mxu0 0.0
    %1747 = vmatprep.subr.mxu0 0.0
    %1748 = vmatpush1.msra.mxu0 0.0
    %1749 = vmatprep.subr.mxu0 0.0
    %1750 = vmatpush1.msra.mxu0 0.0
    %1751 = vmatprep.subr.mxu0 0.0
    %1752 = vmatpush1.msra.mxu0 0.0
    %1753 = vmatprep.subr.mxu0 0.0
    %1754 = vmatpush1.msra.mxu0 0.0
    %1755 = vmatprep.subr.mxu0 0.0
    %1756 = vmatpush1.msra.mxu0 0.0
    %1757 = vmatprep.subr.mxu0 0.0
    %1758 = vmatpush1.msra.mxu0 0.0
    %1759 = vmatprep.subr.mxu0 0.0
    %1760 = vmatpush1.msra.mxu0 0.0
    %1761 = vmatprep.subr.mxu0 0.0
    %1762 = vmatpush1.msra.mxu0 0.0
    %1763 = vmatprep.subr.mxu0 0.0
    %1764 = vmatpush1.msra.mxu0 0.0
    %1765 = vmatprep.subr.mxu0 0.0
    %1766 = vmatpush1.msra.mxu0 0.0
    %1767 = vmatprep.subr.mxu0 0.0
    %1768 = vmatpush1.msra.mxu0 0.0
    %1769 = vmatprep.subr.mxu0 0.0
    %1770 = vmatpush1.msra.mxu0 0.0
    %1771 = vmatprep.subr.mxu0 0.0
    %1772 = vmatpush1.msra.mxu0 0.0
    %1773 = vmatprep.subr.mxu0 0.0
    %1774 = vmatpush1.msra.mxu0 0.0
    %1775 = vmatprep.subr.mxu0 0.0
    %1776 = vmatpush1.msra.mxu0 0.0
    %1777 = vmatprep.subr.mxu0 0.0
    %1778 = vmatpush1.msra.mxu0 0.0
    %1779 = vmatprep.subr.mxu0 0.0
    %1780 = vmatpush1.msra.mxu0 0.0
    %1781 = vmatprep.subr.mxu0 0.0
    %1782 = vmatpush1.msra.mxu0 0.0
    %1783 = vmatprep.mubr.f32.mxu0 0.0
    %1784 = vmatmul.mubr.f32.gmra.mrb[0].mxu0 %v1717
    %v1785 = vpop.f32.mrb[0].mxu0
    %v1786 = vadd.f32 %v241, %v1785
    %v1787 = vpop.f32.mrb[0].mxu0
    %1788 = vdwg.mxu0
    %v1789 = vmul.f32 %v1786, 0.5
    %v1790 = vtanh.pop %v1789
    %v1791 = vadd.f32 %v1790, 1.0
    %v1792 = vmul.f32 %v1791, 0.5
    %v1793 = vtanh.pop %v1786
    %v1794 = vsel %vm134, %v1793, %v1792
    %v1795 = vmul.f32 %v1794, %v1593
    %1797 = vrot.lane.b32.xlu0 %v1794, 64
    %v1798 = vpop.permute.xlu0 %1797
    %v1800 = vmul.f32 %v1794, %v1798
    %1802 = vrot.lane.b32.xlu0 %v1800, 32
    %v1803 = vpop.permute.xlu0 %1802
    %v1805 = vadd.f32 %v1795, %v1803
    %v1806 = vtanh.pop %v1805
    %1808 = vrot.lane.b32.xlu0 %v1806, 64
    %v1809 = vpop.permute.xlu0 %1808
    %v1811 = vmul.f32 %v1794, %v1809
    %v1812 = vmax.f32 %v1811, 0.0
    %v1813 = vlaneseq
    %v1814 = vshrl.u32 %v1813, 7
    %v1815 = vsub.s32 0, %v1814
    %v1816 = vrot.slane %v40, %v1815
    %1818 = vrot.lane.b32.xlu0 %v1816, 96
    %v1819 = vpop.permute.xlu0 %1818
    %v1821 = vmul.f32 %v1812, %v1819
    %1823 = vrot.lane.b32.xlu0 %v1821, 32
    %v1824 = vpop.permute.xlu0 %1823
    %vm1826 = vcmask 254976
    %v1827 = vsel %vm1826, %v1824, 0.0
    %1828 = vadd.xlane.f32.xlu0 %v1827
    %v1829 = vpop.xlane.xlu0 %1828
    %v1830 = vlaneseq
    %v1831 = vshrl.u32 %v1830, 7
    %v1832 = vsub.s32 0, %v1831
    %v1833 = vrot.slane %v41, %v1832
    %v1834 = vadd.f32 %v1829, %v1833
    %vm1835 = vcmask 1024
    %1836 = vst.msk [vmem:[%s2] sm:$0x3] %vm1835, %v1834
    // Predicated region
    $region14: #{tpu_custom_call.1} parent=1 // pred_check
      _
    $region15: #{tpu_custom_call.1} parent=1 // pred_check_branch
      %1838 = sbr.rel (0) target = $region17
    $region16: #{tpu_custom_call.1} parent=1 // pred_region
      _
    $region17: #{tpu_custom_call.1} parent=1 // pred_fallthru
      _
    // Predicated region
    $region18: #{tpu_custom_call.1} parent=1 // pred_check
      _
    $region19: #{tpu_custom_call.1} parent=1 // pred_check_branch
      %1840 = sbr.rel (0) target = $region21
    $region20: #{tpu_custom_call.1} parent=1 // pred_region
      _
    $region21: #{tpu_custom_call.1} parent=1 // pred_fallthru
      _
    %1841 = vsyncpa [#allocation3], 1

</llo_original>
